<compile_context>
chip_gen: v7x
topology: tpu7x:2x2x1
jax: 0.10.0
libtpu: 0.0.40
codegen_flags: <defaults>
</compile_context>

<pallas_src>
import functools
import re
from datetime import datetime

import numpy as np
import jax
import jax.numpy as jnp
from jax import lax
from jax.experimental import pallas as pl
from jax.experimental.pallas import tpu as pltpu

VOCAB = 256   # byte-level vocabulary; id 0 reserved as pad (zero embedding row)
SEQ = 64      # max content tokens kept per log line
DIM = 128     # embedding dimension (one full lane width)

PROMPT_PREFIX = 'Analyze this log entry for potential security threats: '
SECURITY_KEYWORDS = ['failed', 'error', 'denied', 'unauthorized', 'invalid',
                     'attack', 'breach', 'suspicious', 'warning', 'critical']


# --------------------------------------------------------------------------
# Host-side string preprocessing (mirrors LogAnalysisModel._preprocess_log).
# --------------------------------------------------------------------------
def preprocess_log(log_entry: str) -> str:
    timestamp = ''
    m = re.search(r'\d{4}-\d{2}-\d{2}[T\s]\d{2}:\d{2}:\d{2}', log_entry)
    if m:
        try:
            dt = datetime.strptime(m.group(), '%Y-%m-%d %H:%M:%S')
            timestamp = f"[TIME:{dt.strftime('%H:%M:%S')}]"
        except ValueError:
            pass
    ips = re.findall(r'\b(?:\d{1,3}\.){3}\d{1,3}\b', log_entry)
    ip_info = f"[IPs:{','.join(ips)}]" if ips else ''
    found = [kw for kw in SECURITY_KEYWORDS if kw in log_entry.lower()]
    keyword_info = f"[KEYWORDS:{','.join(found)}]" if found else ''
    normalized = re.sub(r'\s+', ' ', log_entry).strip()
    return f'{PROMPT_PREFIX}{timestamp} {ip_info} {keyword_info} {normalized}'


def tokenize(texts, seq_len=SEQ):
    """Deterministic byte-level tokenizer replacing the Ollama prompt encoding.

    The constant instruction prefix (identical for every input) is dropped
    before truncation so the seq_len-token window carries per-line content.
    """
    ids = np.zeros((len(texts), seq_len), dtype=np.int32)   # 0 == pad token
    for i, t in enumerate(texts):
        prompt = preprocess_log(t)
        content = prompt[len(PROMPT_PREFIX):] if prompt.startswith(PROMPT_PREFIX) else prompt
        toks = list(content.encode('utf-8'))[:seq_len]
        ids[i, :len(toks)] = toks
    return jnp.asarray(ids)


# --------------------------------------------------------------------------
# TPU-generation / tiling helpers.
# --------------------------------------------------------------------------
def _accum_dtype():
    """bf16 one-hot accumulation on chips with a bf16 VALU (v6e/v7x); f32 otherwise."""
    try:
        kind = jax.devices()[0].device_kind.lower()
    except Exception:
        return jnp.bfloat16
    if any(v in kind for v in ('v2', 'v3', 'v4', 'v5')):
        return jnp.float32        # no bf16 VALU on these generations
    return jnp.bfloat16


def _batch_tiling(B):
    """Adaptive batch tile: tiny batches -> one sublane-aligned tile; medium
    batches -> 64-row tiles (grid >= 2 so both v7x TCs get work); large
    batches -> 128-row tiles (amortize per-grid-step overhead, fills MXU M)."""
    if B <= 64:
        tb = max(8, ((B + 7) // 8) * 8)
    elif B <= 1024:
        tb = 64
    else:
        tb = 128
    b_pad = ((B + tb - 1) // tb) * tb
    return tb, b_pad


# --------------------------------------------------------------------------
# Pallas kernel: mean of token embeddings via one-hot @ table on the MXU.
# --------------------------------------------------------------------------
def embed_kernel(ids_ref, table_ref, out_ref, *, acc_dtype):
    """Per-batch-tile mean of token embeddings.

    Pad tokens (id 0) hit the zeroed table row 0, so no per-step length mask
    is needed; the token count is recovered from the pad column of `w`.
    """
    tb, S = ids_ref.shape
    V, D = table_ref.shape

    ids = ids_ref[...]                                        # (TB, S) int32, hoisted
    iota_v = lax.broadcasted_iota(jnp.int32, (tb, V), 1)      # (TB, V)

    # W[b, v] = #{s : ids[b, s] == v}; counts <= S are exact in bf16.
    w = (iota_v == ids[:, 0:1]).astype(acc_dtype)             # init from first compare
    for s in range(1, S):                                     # static unroll, S small
        w = w + (iota_v == ids[:, s:s + 1]).astype(acc_dtype)

    # Gather + sum of embeddings as one bf16 MXU matmul: (TB,V)@(V,D) -> f32.
    pooled = jnp.dot(w.astype(jnp.bfloat16), table_ref[...],
                     preferred_element_type=jnp.float32)      # (TB, D)

    # Token count = S - (#pad tokens); pad count lives in column 0 of w.
    count = jnp.float32(S) - w[:, 0:1].astype(jnp.float32)    # (TB, 1)
    inv = pl.reciprocal(jnp.maximum(count, 1.0), approx=False)
    out_ref[...] = pooled * inv                               # mean (0 for empty rows)


def log_analysis_forward(token_ids, emb_table):
    """Pallas equivalent of LogAnalysisModel.forward -> (B, D) float32 embeddings."""
    B, S = token_ids.shape
    V, D = emb_table.shape

    # Row 0 is the pad embedding: zero it here so pad tokens contribute nothing
    # regardless of the table passed in. Cast to bf16 for native MXU rate.
    table = emb_table.at[0].set(0.0).astype(jnp.bfloat16)

    tb, b_pad = _batch_tiling(B)
    if b_pad != B:
        token_ids = jnp.pad(token_ids, ((0, b_pad - B), (0, 0)))   # pad rows = id 0

    kernel = functools.partial(embed_kernel, acc_dtype=_accum_dtype())
    out = pl.pallas_call(
        kernel,
        out_shape=jax.ShapeDtypeStruct((b_pad, D), jnp.float32),
        grid=(b_pad // tb,),
        in_specs=[
            pl.BlockSpec((tb, S), lambda i: (i, 0)),          # token-id tile
            pl.BlockSpec((V, D), lambda i: (0, 0)),           # table: VMEM-resident, DMA'd once
        ],
        out_specs=pl.BlockSpec((tb, D), lambda i: (i, 0)),    # lane-dense output tile
        compiler_params=pltpu.CompilerParams(
            dimension_semantics=("parallel",)),               # shards batch tiles on v7x megacore
    )(token_ids, table)
    return out[:B]


# --------------------------------------------------------------------------
# Demo / self-test.
# --------------------------------------------------------------------------
if __name__ == "__main__":
    texts = [
        "2024-01-01 12:00:00 Failed password for invalid user root from 10.0.0.5",
        "2024-01-01 12:00:05 Accepted publickey for alice from 192.168.1.2 port 22",
        "WARNING suspicious connection attempt denied from 172.16.0.9",
        "system healthy: periodic heartbeat ok",
    ]

    token_ids = tokenize(texts)                               # (4, SEQ) int32

    # Deterministic synthetic embedding table (stands in for the LLM embedder).
    key = jax.random.PRNGKey(0)
    emb_table = jax.random.normal(key, (VOCAB, DIM), dtype=jnp.float32) * 0.02

    out = log_analysis_forward(token_ids, emb_table)
    out = jax.block_until_ready(out)

    # Pure-numpy reference: mean of gathered token embeddings per text,
    # using the same zeroed-pad-row, bf16-rounded table the kernel sees.
    ids_np = np.asarray(token_ids)
    tab_np = np.asarray(
        emb_table.at[0].set(0.0).astype(jnp.bfloat16).astype(jnp.float32))
    ref = np.zeros((len(texts), DIM), dtype=np.float32)
    for b in range(len(texts)):
        toks = ids_np[b][ids_np[b] != 0]
        if toks.size:
            ref[b] = tab_np[toks].sum(axis=0) / toks.size

    assert out.shape == (len(texts), DIM) and out.dtype == jnp.float32
    np.testing.assert_allclose(np.asarray(out), ref, rtol=1e-4, atol=1e-5)
    print("KERNEL_OK")
</pallas_src>

<mosaic_0001>
module attributes {stable_mosaic.version = 11 : i64} {
  func.func @embed_kernel(%arg0: i32, %arg1: memref<8x64xi32, #tpu.memory_space<vmem>>, %arg2: memref<256x128xbf16, #tpu.memory_space<vmem>>, %arg3: memref<8x128xf32, #tpu.memory_space<vmem>>) attributes {dimension_semantics = [#tpu.dimension_semantics<parallel>], iteration_bounds = array<i64: 1>, scalar_prefetch = 0 : i64, scratch_operands = 0 : i64, tpu.core_type = #tpu.core_type<tc>, window_params = [{transform_indices = @transform_0, window_bounds = array<i64: 8, 64>}, {pipeline_mode = #tpu.pipeline_mode<synchronous>, transform_indices = @transform_1, window_bounds = array<i64: 256, 128>}, {transform_indices = @transform_2, window_bounds = array<i64: 8, 128>}]} {
    %c0 = arith.constant 0 : index
    %c0_0 = arith.constant 0 : index
    %0 = vector.load %arg1[%c0, %c0_0] : memref<8x64xi32, #tpu.memory_space<vmem>>, vector<8x64xi32>
    %1 = tpu.iota {dimensions = array<i32: 1>} : vector<8x256xi32>
    %2 = vector.extract_strided_slice %0 {offsets = [0, 0], sizes = [8, 1], strides = [1, 1]} : vector<8x64xi32> to vector<8x1xi32>
    %3 = vector.broadcast %2 : vector<8x1xi32> to vector<8x256xi32>
    %4 = arith.cmpi eq, %1, %3 : vector<8x256xi32>
    %5 = arith.extui %4 : vector<8x256xi1> to vector<8x256xi32>
    %6 = arith.sitofp %5 : vector<8x256xi32> to vector<8x256xf32>
    %7 = arith.truncf %6 : vector<8x256xf32> to vector<8x256xbf16>
    %8 = vector.extract_strided_slice %0 {offsets = [0, 1], sizes = [8, 1], strides = [1, 1]} : vector<8x64xi32> to vector<8x1xi32>
    %9 = vector.broadcast %8 : vector<8x1xi32> to vector<8x256xi32>
    %10 = arith.cmpi eq, %1, %9 : vector<8x256xi32>
    %11 = arith.extui %10 : vector<8x256xi1> to vector<8x256xi32>
    %12 = arith.sitofp %11 : vector<8x256xi32> to vector<8x256xf32>
    %13 = arith.truncf %12 : vector<8x256xf32> to vector<8x256xbf16>
    %14 = arith.addf %7, %13 : vector<8x256xbf16>
    %15 = vector.extract_strided_slice %0 {offsets = [0, 2], sizes = [8, 1], strides = [1, 1]} : vector<8x64xi32> to vector<8x1xi32>
    %16 = vector.broadcast %15 : vector<8x1xi32> to vector<8x256xi32>
    %17 = arith.cmpi eq, %1, %16 : vector<8x256xi32>
    %18 = arith.extui %17 : vector<8x256xi1> to vector<8x256xi32>
    %19 = arith.sitofp %18 : vector<8x256xi32> to vector<8x256xf32>
    %20 = arith.truncf %19 : vector<8x256xf32> to vector<8x256xbf16>
    %21 = arith.addf %14, %20 : vector<8x256xbf16>
    %22 = vector.extract_strided_slice %0 {offsets = [0, 3], sizes = [8, 1], strides = [1, 1]} : vector<8x64xi32> to vector<8x1xi32>
    %23 = vector.broadcast %22 : vector<8x1xi32> to vector<8x256xi32>
    %24 = arith.cmpi eq, %1, %23 : vector<8x256xi32>
    %25 = arith.extui %24 : vector<8x256xi1> to vector<8x256xi32>
    %26 = arith.sitofp %25 : vector<8x256xi32> to vector<8x256xf32>
    %27 = arith.truncf %26 : vector<8x256xf32> to vector<8x256xbf16>
    %28 = arith.addf %21, %27 : vector<8x256xbf16>
    %29 = vector.extract_strided_slice %0 {offsets = [0, 4], sizes = [8, 1], strides = [1, 1]} : vector<8x64xi32> to vector<8x1xi32>
    %30 = vector.broadcast %29 : vector<8x1xi32> to vector<8x256xi32>
    %31 = arith.cmpi eq, %1, %30 : vector<8x256xi32>
    %32 = arith.extui %31 : vector<8x256xi1> to vector<8x256xi32>
    %33 = arith.sitofp %32 : vector<8x256xi32> to vector<8x256xf32>
    %34 = arith.truncf %33 : vector<8x256xf32> to vector<8x256xbf16>
    %35 = arith.addf %28, %34 : vector<8x256xbf16>
    %36 = vector.extract_strided_slice %0 {offsets = [0, 5], sizes = [8, 1], strides = [1, 1]} : vector<8x64xi32> to vector<8x1xi32>
    %37 = vector.broadcast %36 : vector<8x1xi32> to vector<8x256xi32>
    %38 = arith.cmpi eq, %1, %37 : vector<8x256xi32>
    %39 = arith.extui %38 : vector<8x256xi1> to vector<8x256xi32>
    %40 = arith.sitofp %39 : vector<8x256xi32> to vector<8x256xf32>
    %41 = arith.truncf %40 : vector<8x256xf32> to vector<8x256xbf16>
    %42 = arith.addf %35, %41 : vector<8x256xbf16>
    %43 = vector.extract_strided_slice %0 {offsets = [0, 6], sizes = [8, 1], strides = [1, 1]} : vector<8x64xi32> to vector<8x1xi32>
    %44 = vector.broadcast %43 : vector<8x1xi32> to vector<8x256xi32>
    %45 = arith.cmpi eq, %1, %44 : vector<8x256xi32>
    %46 = arith.extui %45 : vector<8x256xi1> to vector<8x256xi32>
    %47 = arith.sitofp %46 : vector<8x256xi32> to vector<8x256xf32>
    %48 = arith.truncf %47 : vector<8x256xf32> to vector<8x256xbf16>
    %49 = arith.addf %42, %48 : vector<8x256xbf16>
    %50 = vector.extract_strided_slice %0 {offsets = [0, 7], sizes = [8, 1], strides = [1, 1]} : vector<8x64xi32> to vector<8x1xi32>
    %51 = vector.broadcast %50 : vector<8x1xi32> to vector<8x256xi32>
    %52 = arith.cmpi eq, %1, %51 : vector<8x256xi32>
    %53 = arith.extui %52 : vector<8x256xi1> to vector<8x256xi32>
    %54 = arith.sitofp %53 : vector<8x256xi32> to vector<8x256xf32>
    %55 = arith.truncf %54 : vector<8x256xf32> to vector<8x256xbf16>
    %56 = arith.addf %49, %55 : vector<8x256xbf16>
    %57 = vector.extract_strided_slice %0 {offsets = [0, 8], sizes = [8, 1], strides = [1, 1]} : vector<8x64xi32> to vector<8x1xi32>
    %58 = vector.broadcast %57 : vector<8x1xi32> to vector<8x256xi32>
    %59 = arith.cmpi eq, %1, %58 : vector<8x256xi32>
    %60 = arith.extui %59 : vector<8x256xi1> to vector<8x256xi32>
    %61 = arith.sitofp %60 : vector<8x256xi32> to vector<8x256xf32>
    %62 = arith.truncf %61 : vector<8x256xf32> to vector<8x256xbf16>
    %63 = arith.addf %56, %62 : vector<8x256xbf16>
    %64 = vector.extract_strided_slice %0 {offsets = [0, 9], sizes = [8, 1], strides = [1, 1]} : vector<8x64xi32> to vector<8x1xi32>
    %65 = vector.broadcast %64 : vector<8x1xi32> to vector<8x256xi32>
    %66 = arith.cmpi eq, %1, %65 : vector<8x256xi32>
    %67 = arith.extui %66 : vector<8x256xi1> to vector<8x256xi32>
    %68 = arith.sitofp %67 : vector<8x256xi32> to vector<8x256xf32>
    %69 = arith.truncf %68 : vector<8x256xf32> to vector<8x256xbf16>
    %70 = arith.addf %63, %69 : vector<8x256xbf16>
    %71 = vector.extract_strided_slice %0 {offsets = [0, 10], sizes = [8, 1], strides = [1, 1]} : vector<8x64xi32> to vector<8x1xi32>
    %72 = vector.broadcast %71 : vector<8x1xi32> to vector<8x256xi32>
    %73 = arith.cmpi eq, %1, %72 : vector<8x256xi32>
    %74 = arith.extui %73 : vector<8x256xi1> to vector<8x256xi32>
    %75 = arith.sitofp %74 : vector<8x256xi32> to vector<8x256xf32>
    %76 = arith.truncf %75 : vector<8x256xf32> to vector<8x256xbf16>
    %77 = arith.addf %70, %76 : vector<8x256xbf16>
    %78 = vector.extract_strided_slice %0 {offsets = [0, 11], sizes = [8, 1], strides = [1, 1]} : vector<8x64xi32> to vector<8x1xi32>
    %79 = vector.broadcast %78 : vector<8x1xi32> to vector<8x256xi32>
    %80 = arith.cmpi eq, %1, %79 : vector<8x256xi32>
    %81 = arith.extui %80 : vector<8x256xi1> to vector<8x256xi32>
    %82 = arith.sitofp %81 : vector<8x256xi32> to vector<8x256xf32>
    %83 = arith.truncf %82 : vector<8x256xf32> to vector<8x256xbf16>
    %84 = arith.addf %77, %83 : vector<8x256xbf16>
    %85 = vector.extract_strided_slice %0 {offsets = [0, 12], sizes = [8, 1], strides = [1, 1]} : vector<8x64xi32> to vector<8x1xi32>
    %86 = vector.broadcast %85 : vector<8x1xi32> to vector<8x256xi32>
    %87 = arith.cmpi eq, %1, %86 : vector<8x256xi32>
    %88 = arith.extui %87 : vector<8x256xi1> to vector<8x256xi32>
    %89 = arith.sitofp %88 : vector<8x256xi32> to vector<8x256xf32>
    %90 = arith.truncf %89 : vector<8x256xf32> to vector<8x256xbf16>
    %91 = arith.addf %84, %90 : vector<8x256xbf16>
    %92 = vector.extract_strided_slice %0 {offsets = [0, 13], sizes = [8, 1], strides = [1, 1]} : vector<8x64xi32> to vector<8x1xi32>
    %93 = vector.broadcast %92 : vector<8x1xi32> to vector<8x256xi32>
    %94 = arith.cmpi eq, %1, %93 : vector<8x256xi32>
    %95 = arith.extui %94 : vector<8x256xi1> to vector<8x256xi32>
    %96 = arith.sitofp %95 : vector<8x256xi32> to vector<8x256xf32>
    %97 = arith.truncf %96 : vector<8x256xf32> to vector<8x256xbf16>
    %98 = arith.addf %91, %97 : vector<8x256xbf16>
    %99 = vector.extract_strided_slice %0 {offsets = [0, 14], sizes = [8, 1], strides = [1, 1]} : vector<8x64xi32> to vector<8x1xi32>
    %100 = vector.broadcast %99 : vector<8x1xi32> to vector<8x256xi32>
    %101 = arith.cmpi eq, %1, %100 : vector<8x256xi32>
    %102 = arith.extui %101 : vector<8x256xi1> to vector<8x256xi32>
    %103 = arith.sitofp %102 : vector<8x256xi32> to vector<8x256xf32>
    %104 = arith.truncf %103 : vector<8x256xf32> to vector<8x256xbf16>
    %105 = arith.addf %98, %104 : vector<8x256xbf16>
    %106 = vector.extract_strided_slice %0 {offsets = [0, 15], sizes = [8, 1], strides = [1, 1]} : vector<8x64xi32> to vector<8x1xi32>
    %107 = vector.broadcast %106 : vector<8x1xi32> to vector<8x256xi32>
    %108 = arith.cmpi eq, %1, %107 : vector<8x256xi32>
    %109 = arith.extui %108 : vector<8x256xi1> to vector<8x256xi32>
    %110 = arith.sitofp %109 : vector<8x256xi32> to vector<8x256xf32>
    %111 = arith.truncf %110 : vector<8x256xf32> to vector<8x256xbf16>
    %112 = arith.addf %105, %111 : vector<8x256xbf16>
    %113 = vector.extract_strided_slice %0 {offsets = [0, 16], sizes = [8, 1], strides = [1, 1]} : vector<8x64xi32> to vector<8x1xi32>
    %114 = vector.broadcast %113 : vector<8x1xi32> to vector<8x256xi32>
    %115 = arith.cmpi eq, %1, %114 : vector<8x256xi32>
    %116 = arith.extui %115 : vector<8x256xi1> to vector<8x256xi32>
    %117 = arith.sitofp %116 : vector<8x256xi32> to vector<8x256xf32>
    %118 = arith.truncf %117 : vector<8x256xf32> to vector<8x256xbf16>
    %119 = arith.addf %112, %118 : vector<8x256xbf16>
    %120 = vector.extract_strided_slice %0 {offsets = [0, 17], sizes = [8, 1], strides = [1, 1]} : vector<8x64xi32> to vector<8x1xi32>
    %121 = vector.broadcast %120 : vector<8x1xi32> to vector<8x256xi32>
    %122 = arith.cmpi eq, %1, %121 : vector<8x256xi32>
    %123 = arith.extui %122 : vector<8x256xi1> to vector<8x256xi32>
    %124 = arith.sitofp %123 : vector<8x256xi32> to vector<8x256xf32>
    %125 = arith.truncf %124 : vector<8x256xf32> to vector<8x256xbf16>
    %126 = arith.addf %119, %125 : vector<8x256xbf16>
    %127 = vector.extract_strided_slice %0 {offsets = [0, 18], sizes = [8, 1], strides = [1, 1]} : vector<8x64xi32> to vector<8x1xi32>
    %128 = vector.broadcast %127 : vector<8x1xi32> to vector<8x256xi32>
    %129 = arith.cmpi eq, %1, %128 : vector<8x256xi32>
    %130 = arith.extui %129 : vector<8x256xi1> to vector<8x256xi32>
    %131 = arith.sitofp %130 : vector<8x256xi32> to vector<8x256xf32>
    %132 = arith.truncf %131 : vector<8x256xf32> to vector<8x256xbf16>
    %133 = arith.addf %126, %132 : vector<8x256xbf16>
    %134 = vector.extract_strided_slice %0 {offsets = [0, 19], sizes = [8, 1], strides = [1, 1]} : vector<8x64xi32> to vector<8x1xi32>
    %135 = vector.broadcast %134 : vector<8x1xi32> to vector<8x256xi32>
    %136 = arith.cmpi eq, %1, %135 : vector<8x256xi32>
    %137 = arith.extui %136 : vector<8x256xi1> to vector<8x256xi32>
    %138 = arith.sitofp %137 : vector<8x256xi32> to vector<8x256xf32>
    %139 = arith.truncf %138 : vector<8x256xf32> to vector<8x256xbf16>
    %140 = arith.addf %133, %139 : vector<8x256xbf16>
    %141 = vector.extract_strided_slice %0 {offsets = [0, 20], sizes = [8, 1], strides = [1, 1]} : vector<8x64xi32> to vector<8x1xi32>
    %142 = vector.broadcast %141 : vector<8x1xi32> to vector<8x256xi32>
    %143 = arith.cmpi eq, %1, %142 : vector<8x256xi32>
    %144 = arith.extui %143 : vector<8x256xi1> to vector<8x256xi32>
    %145 = arith.sitofp %144 : vector<8x256xi32> to vector<8x256xf32>
    %146 = arith.truncf %145 : vector<8x256xf32> to vector<8x256xbf16>
    %147 = arith.addf %140, %146 : vector<8x256xbf16>
    %148 = vector.extract_strided_slice %0 {offsets = [0, 21], sizes = [8, 1], strides = [1, 1]} : vector<8x64xi32> to vector<8x1xi32>
    %149 = vector.broadcast %148 : vector<8x1xi32> to vector<8x256xi32>
    %150 = arith.cmpi eq, %1, %149 : vector<8x256xi32>
    %151 = arith.extui %150 : vector<8x256xi1> to vector<8x256xi32>
    %152 = arith.sitofp %151 : vector<8x256xi32> to vector<8x256xf32>
    %153 = arith.truncf %152 : vector<8x256xf32> to vector<8x256xbf16>
    %154 = arith.addf %147, %153 : vector<8x256xbf16>
    %155 = vector.extract_strided_slice %0 {offsets = [0, 22], sizes = [8, 1], strides = [1, 1]} : vector<8x64xi32> to vector<8x1xi32>
    %156 = vector.broadcast %155 : vector<8x1xi32> to vector<8x256xi32>
    %157 = arith.cmpi eq, %1, %156 : vector<8x256xi32>
    %158 = arith.extui %157 : vector<8x256xi1> to vector<8x256xi32>
    %159 = arith.sitofp %158 : vector<8x256xi32> to vector<8x256xf32>
    %160 = arith.truncf %159 : vector<8x256xf32> to vector<8x256xbf16>
    %161 = arith.addf %154, %160 : vector<8x256xbf16>
    %162 = vector.extract_strided_slice %0 {offsets = [0, 23], sizes = [8, 1], strides = [1, 1]} : vector<8x64xi32> to vector<8x1xi32>
    %163 = vector.broadcast %162 : vector<8x1xi32> to vector<8x256xi32>
    %164 = arith.cmpi eq, %1, %163 : vector<8x256xi32>
    %165 = arith.extui %164 : vector<8x256xi1> to vector<8x256xi32>
    %166 = arith.sitofp %165 : vector<8x256xi32> to vector<8x256xf32>
    %167 = arith.truncf %166 : vector<8x256xf32> to vector<8x256xbf16>
    %168 = arith.addf %161, %167 : vector<8x256xbf16>
    %169 = vector.extract_strided_slice %0 {offsets = [0, 24], sizes = [8, 1], strides = [1, 1]} : vector<8x64xi32> to vector<8x1xi32>
    %170 = vector.broadcast %169 : vector<8x1xi32> to vector<8x256xi32>
    %171 = arith.cmpi eq, %1, %170 : vector<8x256xi32>
    %172 = arith.extui %171 : vector<8x256xi1> to vector<8x256xi32>
    %173 = arith.sitofp %172 : vector<8x256xi32> to vector<8x256xf32>
    %174 = arith.truncf %173 : vector<8x256xf32> to vector<8x256xbf16>
    %175 = arith.addf %168, %174 : vector<8x256xbf16>
    %176 = vector.extract_strided_slice %0 {offsets = [0, 25], sizes = [8, 1], strides = [1, 1]} : vector<8x64xi32> to vector<8x1xi32>
    %177 = vector.broadcast %176 : vector<8x1xi32> to vector<8x256xi32>
    %178 = arith.cmpi eq, %1, %177 : vector<8x256xi32>
    %179 = arith.extui %178 : vector<8x256xi1> to vector<8x256xi32>
    %180 = arith.sitofp %179 : vector<8x256xi32> to vector<8x256xf32>
    %181 = arith.truncf %180 : vector<8x256xf32> to vector<8x256xbf16>
    %182 = arith.addf %175, %181 : vector<8x256xbf16>
    %183 = vector.extract_strided_slice %0 {offsets = [0, 26], sizes = [8, 1], strides = [1, 1]} : vector<8x64xi32> to vector<8x1xi32>
    %184 = vector.broadcast %183 : vector<8x1xi32> to vector<8x256xi32>
    %185 = arith.cmpi eq, %1, %184 : vector<8x256xi32>
    %186 = arith.extui %185 : vector<8x256xi1> to vector<8x256xi32>
    %187 = arith.sitofp %186 : vector<8x256xi32> to vector<8x256xf32>
    %188 = arith.truncf %187 : vector<8x256xf32> to vector<8x256xbf16>
    %189 = arith.addf %182, %188 : vector<8x256xbf16>
    %190 = vector.extract_strided_slice %0 {offsets = [0, 27], sizes = [8, 1], strides = [1, 1]} : vector<8x64xi32> to vector<8x1xi32>
    %191 = vector.broadcast %190 : vector<8x1xi32> to vector<8x256xi32>
    %192 = arith.cmpi eq, %1, %191 : vector<8x256xi32>
    %193 = arith.extui %192 : vector<8x256xi1> to vector<8x256xi32>
    %194 = arith.sitofp %193 : vector<8x256xi32> to vector<8x256xf32>
    %195 = arith.truncf %194 : vector<8x256xf32> to vector<8x256xbf16>
    %196 = arith.addf %189, %195 : vector<8x256xbf16>
    %197 = vector.extract_strided_slice %0 {offsets = [0, 28], sizes = [8, 1], strides = [1, 1]} : vector<8x64xi32> to vector<8x1xi32>
    %198 = vector.broadcast %197 : vector<8x1xi32> to vector<8x256xi32>
    %199 = arith.cmpi eq, %1, %198 : vector<8x256xi32>
    %200 = arith.extui %199 : vector<8x256xi1> to vector<8x256xi32>
    %201 = arith.sitofp %200 : vector<8x256xi32> to vector<8x256xf32>
    %202 = arith.truncf %201 : vector<8x256xf32> to vector<8x256xbf16>
    %203 = arith.addf %196, %202 : vector<8x256xbf16>
    %204 = vector.extract_strided_slice %0 {offsets = [0, 29], sizes = [8, 1], strides = [1, 1]} : vector<8x64xi32> to vector<8x1xi32>
    %205 = vector.broadcast %204 : vector<8x1xi32> to vector<8x256xi32>
    %206 = arith.cmpi eq, %1, %205 : vector<8x256xi32>
    %207 = arith.extui %206 : vector<8x256xi1> to vector<8x256xi32>
    %208 = arith.sitofp %207 : vector<8x256xi32> to vector<8x256xf32>
    %209 = arith.truncf %208 : vector<8x256xf32> to vector<8x256xbf16>
    %210 = arith.addf %203, %209 : vector<8x256xbf16>
    %211 = vector.extract_strided_slice %0 {offsets = [0, 30], sizes = [8, 1], strides = [1, 1]} : vector<8x64xi32> to vector<8x1xi32>
    %212 = vector.broadcast %211 : vector<8x1xi32> to vector<8x256xi32>
    %213 = arith.cmpi eq, %1, %212 : vector<8x256xi32>
    %214 = arith.extui %213 : vector<8x256xi1> to vector<8x256xi32>
    %215 = arith.sitofp %214 : vector<8x256xi32> to vector<8x256xf32>
    %216 = arith.truncf %215 : vector<8x256xf32> to vector<8x256xbf16>
    %217 = arith.addf %210, %216 : vector<8x256xbf16>
    %218 = vector.extract_strided_slice %0 {offsets = [0, 31], sizes = [8, 1], strides = [1, 1]} : vector<8x64xi32> to vector<8x1xi32>
    %219 = vector.broadcast %218 : vector<8x1xi32> to vector<8x256xi32>
    %220 = arith.cmpi eq, %1, %219 : vector<8x256xi32>
    %221 = arith.extui %220 : vector<8x256xi1> to vector<8x256xi32>
    %222 = arith.sitofp %221 : vector<8x256xi32> to vector<8x256xf32>
    %223 = arith.truncf %222 : vector<8x256xf32> to vector<8x256xbf16>
    %224 = arith.addf %217, %223 : vector<8x256xbf16>
    %225 = vector.extract_strided_slice %0 {offsets = [0, 32], sizes = [8, 1], strides = [1, 1]} : vector<8x64xi32> to vector<8x1xi32>
    %226 = vector.broadcast %225 : vector<8x1xi32> to vector<8x256xi32>
    %227 = arith.cmpi eq, %1, %226 : vector<8x256xi32>
    %228 = arith.extui %227 : vector<8x256xi1> to vector<8x256xi32>
    %229 = arith.sitofp %228 : vector<8x256xi32> to vector<8x256xf32>
    %230 = arith.truncf %229 : vector<8x256xf32> to vector<8x256xbf16>
    %231 = arith.addf %224, %230 : vector<8x256xbf16>
    %232 = vector.extract_strided_slice %0 {offsets = [0, 33], sizes = [8, 1], strides = [1, 1]} : vector<8x64xi32> to vector<8x1xi32>
    %233 = vector.broadcast %232 : vector<8x1xi32> to vector<8x256xi32>
    %234 = arith.cmpi eq, %1, %233 : vector<8x256xi32>
    %235 = arith.extui %234 : vector<8x256xi1> to vector<8x256xi32>
    %236 = arith.sitofp %235 : vector<8x256xi32> to vector<8x256xf32>
    %237 = arith.truncf %236 : vector<8x256xf32> to vector<8x256xbf16>
    %238 = arith.addf %231, %237 : vector<8x256xbf16>
    %239 = vector.extract_strided_slice %0 {offsets = [0, 34], sizes = [8, 1], strides = [1, 1]} : vector<8x64xi32> to vector<8x1xi32>
    %240 = vector.broadcast %239 : vector<8x1xi32> to vector<8x256xi32>
    %241 = arith.cmpi eq, %1, %240 : vector<8x256xi32>
    %242 = arith.extui %241 : vector<8x256xi1> to vector<8x256xi32>
    %243 = arith.sitofp %242 : vector<8x256xi32> to vector<8x256xf32>
    %244 = arith.truncf %243 : vector<8x256xf32> to vector<8x256xbf16>
    %245 = arith.addf %238, %244 : vector<8x256xbf16>
    %246 = vector.extract_strided_slice %0 {offsets = [0, 35], sizes = [8, 1], strides = [1, 1]} : vector<8x64xi32> to vector<8x1xi32>
    %247 = vector.broadcast %246 : vector<8x1xi32> to vector<8x256xi32>
    %248 = arith.cmpi eq, %1, %247 : vector<8x256xi32>
    %249 = arith.extui %248 : vector<8x256xi1> to vector<8x256xi32>
    %250 = arith.sitofp %249 : vector<8x256xi32> to vector<8x256xf32>
    %251 = arith.truncf %250 : vector<8x256xf32> to vector<8x256xbf16>
    %252 = arith.addf %245, %251 : vector<8x256xbf16>
    %253 = vector.extract_strided_slice %0 {offsets = [0, 36], sizes = [8, 1], strides = [1, 1]} : vector<8x64xi32> to vector<8x1xi32>
    %254 = vector.broadcast %253 : vector<8x1xi32> to vector<8x256xi32>
    %255 = arith.cmpi eq, %1, %254 : vector<8x256xi32>
    %256 = arith.extui %255 : vector<8x256xi1> to vector<8x256xi32>
    %257 = arith.sitofp %256 : vector<8x256xi32> to vector<8x256xf32>
    %258 = arith.truncf %257 : vector<8x256xf32> to vector<8x256xbf16>
    %259 = arith.addf %252, %258 : vector<8x256xbf16>
    %260 = vector.extract_strided_slice %0 {offsets = [0, 37], sizes = [8, 1], strides = [1, 1]} : vector<8x64xi32> to vector<8x1xi32>
    %261 = vector.broadcast %260 : vector<8x1xi32> to vector<8x256xi32>
    %262 = arith.cmpi eq, %1, %261 : vector<8x256xi32>
    %263 = arith.extui %262 : vector<8x256xi1> to vector<8x256xi32>
    %264 = arith.sitofp %263 : vector<8x256xi32> to vector<8x256xf32>
    %265 = arith.truncf %264 : vector<8x256xf32> to vector<8x256xbf16>
    %266 = arith.addf %259, %265 : vector<8x256xbf16>
    %267 = vector.extract_strided_slice %0 {offsets = [0, 38], sizes = [8, 1], strides = [1, 1]} : vector<8x64xi32> to vector<8x1xi32>
    %268 = vector.broadcast %267 : vector<8x1xi32> to vector<8x256xi32>
    %269 = arith.cmpi eq, %1, %268 : vector<8x256xi32>
    %270 = arith.extui %269 : vector<8x256xi1> to vector<8x256xi32>
    %271 = arith.sitofp %270 : vector<8x256xi32> to vector<8x256xf32>
    %272 = arith.truncf %271 : vector<8x256xf32> to vector<8x256xbf16>
    %273 = arith.addf %266, %272 : vector<8x256xbf16>
    %274 = vector.extract_strided_slice %0 {offsets = [0, 39], sizes = [8, 1], strides = [1, 1]} : vector<8x64xi32> to vector<8x1xi32>
    %275 = vector.broadcast %274 : vector<8x1xi32> to vector<8x256xi32>
    %276 = arith.cmpi eq, %1, %275 : vector<8x256xi32>
    %277 = arith.extui %276 : vector<8x256xi1> to vector<8x256xi32>
    %278 = arith.sitofp %277 : vector<8x256xi32> to vector<8x256xf32>
    %279 = arith.truncf %278 : vector<8x256xf32> to vector<8x256xbf16>
    %280 = arith.addf %273, %279 : vector<8x256xbf16>
    %281 = vector.extract_strided_slice %0 {offsets = [0, 40], sizes = [8, 1], strides = [1, 1]} : vector<8x64xi32> to vector<8x1xi32>
    %282 = vector.broadcast %281 : vector<8x1xi32> to vector<8x256xi32>
    %283 = arith.cmpi eq, %1, %282 : vector<8x256xi32>
    %284 = arith.extui %283 : vector<8x256xi1> to vector<8x256xi32>
    %285 = arith.sitofp %284 : vector<8x256xi32> to vector<8x256xf32>
    %286 = arith.truncf %285 : vector<8x256xf32> to vector<8x256xbf16>
    %287 = arith.addf %280, %286 : vector<8x256xbf16>
    %288 = vector.extract_strided_slice %0 {offsets = [0, 41], sizes = [8, 1], strides = [1, 1]} : vector<8x64xi32> to vector<8x1xi32>
    %289 = vector.broadcast %288 : vector<8x1xi32> to vector<8x256xi32>
    %290 = arith.cmpi eq, %1, %289 : vector<8x256xi32>
    %291 = arith.extui %290 : vector<8x256xi1> to vector<8x256xi32>
    %292 = arith.sitofp %291 : vector<8x256xi32> to vector<8x256xf32>
    %293 = arith.truncf %292 : vector<8x256xf32> to vector<8x256xbf16>
    %294 = arith.addf %287, %293 : vector<8x256xbf16>
    %295 = vector.extract_strided_slice %0 {offsets = [0, 42], sizes = [8, 1], strides = [1, 1]} : vector<8x64xi32> to vector<8x1xi32>
    %296 = vector.broadcast %295 : vector<8x1xi32> to vector<8x256xi32>
    %297 = arith.cmpi eq, %1, %296 : vector<8x256xi32>
    %298 = arith.extui %297 : vector<8x256xi1> to vector<8x256xi32>
    %299 = arith.sitofp %298 : vector<8x256xi32> to vector<8x256xf32>
    %300 = arith.truncf %299 : vector<8x256xf32> to vector<8x256xbf16>
    %301 = arith.addf %294, %300 : vector<8x256xbf16>
    %302 = vector.extract_strided_slice %0 {offsets = [0, 43], sizes = [8, 1], strides = [1, 1]} : vector<8x64xi32> to vector<8x1xi32>
    %303 = vector.broadcast %302 : vector<8x1xi32> to vector<8x256xi32>
    %304 = arith.cmpi eq, %1, %303 : vector<8x256xi32>
    %305 = arith.extui %304 : vector<8x256xi1> to vector<8x256xi32>
    %306 = arith.sitofp %305 : vector<8x256xi32> to vector<8x256xf32>
    %307 = arith.truncf %306 : vector<8x256xf32> to vector<8x256xbf16>
    %308 = arith.addf %301, %307 : vector<8x256xbf16>
    %309 = vector.extract_strided_slice %0 {offsets = [0, 44], sizes = [8, 1], strides = [1, 1]} : vector<8x64xi32> to vector<8x1xi32>
    %310 = vector.broadcast %309 : vector<8x1xi32> to vector<8x256xi32>
    %311 = arith.cmpi eq, %1, %310 : vector<8x256xi32>
    %312 = arith.extui %311 : vector<8x256xi1> to vector<8x256xi32>
    %313 = arith.sitofp %312 : vector<8x256xi32> to vector<8x256xf32>
    %314 = arith.truncf %313 : vector<8x256xf32> to vector<8x256xbf16>
    %315 = arith.addf %308, %314 : vector<8x256xbf16>
    %316 = vector.extract_strided_slice %0 {offsets = [0, 45], sizes = [8, 1], strides = [1, 1]} : vector<8x64xi32> to vector<8x1xi32>
    %317 = vector.broadcast %316 : vector<8x1xi32> to vector<8x256xi32>
    %318 = arith.cmpi eq, %1, %317 : vector<8x256xi32>
    %319 = arith.extui %318 : vector<8x256xi1> to vector<8x256xi32>
    %320 = arith.sitofp %319 : vector<8x256xi32> to vector<8x256xf32>
    %321 = arith.truncf %320 : vector<8x256xf32> to vector<8x256xbf16>
    %322 = arith.addf %315, %321 : vector<8x256xbf16>
    %323 = vector.extract_strided_slice %0 {offsets = [0, 46], sizes = [8, 1], strides = [1, 1]} : vector<8x64xi32> to vector<8x1xi32>
    %324 = vector.broadcast %323 : vector<8x1xi32> to vector<8x256xi32>
    %325 = arith.cmpi eq, %1, %324 : vector<8x256xi32>
    %326 = arith.extui %325 : vector<8x256xi1> to vector<8x256xi32>
    %327 = arith.sitofp %326 : vector<8x256xi32> to vector<8x256xf32>
    %328 = arith.truncf %327 : vector<8x256xf32> to vector<8x256xbf16>
    %329 = arith.addf %322, %328 : vector<8x256xbf16>
    %330 = vector.extract_strided_slice %0 {offsets = [0, 47], sizes = [8, 1], strides = [1, 1]} : vector<8x64xi32> to vector<8x1xi32>
    %331 = vector.broadcast %330 : vector<8x1xi32> to vector<8x256xi32>
    %332 = arith.cmpi eq, %1, %331 : vector<8x256xi32>
    %333 = arith.extui %332 : vector<8x256xi1> to vector<8x256xi32>
    %334 = arith.sitofp %333 : vector<8x256xi32> to vector<8x256xf32>
    %335 = arith.truncf %334 : vector<8x256xf32> to vector<8x256xbf16>
    %336 = arith.addf %329, %335 : vector<8x256xbf16>
    %337 = vector.extract_strided_slice %0 {offsets = [0, 48], sizes = [8, 1], strides = [1, 1]} : vector<8x64xi32> to vector<8x1xi32>
    %338 = vector.broadcast %337 : vector<8x1xi32> to vector<8x256xi32>
    %339 = arith.cmpi eq, %1, %338 : vector<8x256xi32>
    %340 = arith.extui %339 : vector<8x256xi1> to vector<8x256xi32>
    %341 = arith.sitofp %340 : vector<8x256xi32> to vector<8x256xf32>
    %342 = arith.truncf %341 : vector<8x256xf32> to vector<8x256xbf16>
    %343 = arith.addf %336, %342 : vector<8x256xbf16>
    %344 = vector.extract_strided_slice %0 {offsets = [0, 49], sizes = [8, 1], strides = [1, 1]} : vector<8x64xi32> to vector<8x1xi32>
    %345 = vector.broadcast %344 : vector<8x1xi32> to vector<8x256xi32>
    %346 = arith.cmpi eq, %1, %345 : vector<8x256xi32>
    %347 = arith.extui %346 : vector<8x256xi1> to vector<8x256xi32>
    %348 = arith.sitofp %347 : vector<8x256xi32> to vector<8x256xf32>
    %349 = arith.truncf %348 : vector<8x256xf32> to vector<8x256xbf16>
    %350 = arith.addf %343, %349 : vector<8x256xbf16>
    %351 = vector.extract_strided_slice %0 {offsets = [0, 50], sizes = [8, 1], strides = [1, 1]} : vector<8x64xi32> to vector<8x1xi32>
    %352 = vector.broadcast %351 : vector<8x1xi32> to vector<8x256xi32>
    %353 = arith.cmpi eq, %1, %352 : vector<8x256xi32>
    %354 = arith.extui %353 : vector<8x256xi1> to vector<8x256xi32>
    %355 = arith.sitofp %354 : vector<8x256xi32> to vector<8x256xf32>
    %356 = arith.truncf %355 : vector<8x256xf32> to vector<8x256xbf16>
    %357 = arith.addf %350, %356 : vector<8x256xbf16>
    %358 = vector.extract_strided_slice %0 {offsets = [0, 51], sizes = [8, 1], strides = [1, 1]} : vector<8x64xi32> to vector<8x1xi32>
    %359 = vector.broadcast %358 : vector<8x1xi32> to vector<8x256xi32>
    %360 = arith.cmpi eq, %1, %359 : vector<8x256xi32>
    %361 = arith.extui %360 : vector<8x256xi1> to vector<8x256xi32>
    %362 = arith.sitofp %361 : vector<8x256xi32> to vector<8x256xf32>
    %363 = arith.truncf %362 : vector<8x256xf32> to vector<8x256xbf16>
    %364 = arith.addf %357, %363 : vector<8x256xbf16>
    %365 = vector.extract_strided_slice %0 {offsets = [0, 52], sizes = [8, 1], strides = [1, 1]} : vector<8x64xi32> to vector<8x1xi32>
    %366 = vector.broadcast %365 : vector<8x1xi32> to vector<8x256xi32>
    %367 = arith.cmpi eq, %1, %366 : vector<8x256xi32>
    %368 = arith.extui %367 : vector<8x256xi1> to vector<8x256xi32>
    %369 = arith.sitofp %368 : vector<8x256xi32> to vector<8x256xf32>
    %370 = arith.truncf %369 : vector<8x256xf32> to vector<8x256xbf16>
    %371 = arith.addf %364, %370 : vector<8x256xbf16>
    %372 = vector.extract_strided_slice %0 {offsets = [0, 53], sizes = [8, 1], strides = [1, 1]} : vector<8x64xi32> to vector<8x1xi32>
    %373 = vector.broadcast %372 : vector<8x1xi32> to vector<8x256xi32>
    %374 = arith.cmpi eq, %1, %373 : vector<8x256xi32>
    %375 = arith.extui %374 : vector<8x256xi1> to vector<8x256xi32>
    %376 = arith.sitofp %375 : vector<8x256xi32> to vector<8x256xf32>
    %377 = arith.truncf %376 : vector<8x256xf32> to vector<8x256xbf16>
    %378 = arith.addf %371, %377 : vector<8x256xbf16>
    %379 = vector.extract_strided_slice %0 {offsets = [0, 54], sizes = [8, 1], strides = [1, 1]} : vector<8x64xi32> to vector<8x1xi32>
    %380 = vector.broadcast %379 : vector<8x1xi32> to vector<8x256xi32>
    %381 = arith.cmpi eq, %1, %380 : vector<8x256xi32>
    %382 = arith.extui %381 : vector<8x256xi1> to vector<8x256xi32>
    %383 = arith.sitofp %382 : vector<8x256xi32> to vector<8x256xf32>
    %384 = arith.truncf %383 : vector<8x256xf32> to vector<8x256xbf16>
    %385 = arith.addf %378, %384 : vector<8x256xbf16>
    %386 = vector.extract_strided_slice %0 {offsets = [0, 55], sizes = [8, 1], strides = [1, 1]} : vector<8x64xi32> to vector<8x1xi32>
    %387 = vector.broadcast %386 : vector<8x1xi32> to vector<8x256xi32>
    %388 = arith.cmpi eq, %1, %387 : vector<8x256xi32>
    %389 = arith.extui %388 : vector<8x256xi1> to vector<8x256xi32>
    %390 = arith.sitofp %389 : vector<8x256xi32> to vector<8x256xf32>
    %391 = arith.truncf %390 : vector<8x256xf32> to vector<8x256xbf16>
    %392 = arith.addf %385, %391 : vector<8x256xbf16>
    %393 = vector.extract_strided_slice %0 {offsets = [0, 56], sizes = [8, 1], strides = [1, 1]} : vector<8x64xi32> to vector<8x1xi32>
    %394 = vector.broadcast %393 : vector<8x1xi32> to vector<8x256xi32>
    %395 = arith.cmpi eq, %1, %394 : vector<8x256xi32>
    %396 = arith.extui %395 : vector<8x256xi1> to vector<8x256xi32>
    %397 = arith.sitofp %396 : vector<8x256xi32> to vector<8x256xf32>
    %398 = arith.truncf %397 : vector<8x256xf32> to vector<8x256xbf16>
    %399 = arith.addf %392, %398 : vector<8x256xbf16>
    %400 = vector.extract_strided_slice %0 {offsets = [0, 57], sizes = [8, 1], strides = [1, 1]} : vector<8x64xi32> to vector<8x1xi32>
    %401 = vector.broadcast %400 : vector<8x1xi32> to vector<8x256xi32>
    %402 = arith.cmpi eq, %1, %401 : vector<8x256xi32>
    %403 = arith.extui %402 : vector<8x256xi1> to vector<8x256xi32>
    %404 = arith.sitofp %403 : vector<8x256xi32> to vector<8x256xf32>
    %405 = arith.truncf %404 : vector<8x256xf32> to vector<8x256xbf16>
    %406 = arith.addf %399, %405 : vector<8x256xbf16>
    %407 = vector.extract_strided_slice %0 {offsets = [0, 58], sizes = [8, 1], strides = [1, 1]} : vector<8x64xi32> to vector<8x1xi32>
    %408 = vector.broadcast %407 : vector<8x1xi32> to vector<8x256xi32>
    %409 = arith.cmpi eq, %1, %408 : vector<8x256xi32>
    %410 = arith.extui %409 : vector<8x256xi1> to vector<8x256xi32>
    %411 = arith.sitofp %410 : vector<8x256xi32> to vector<8x256xf32>
    %412 = arith.truncf %411 : vector<8x256xf32> to vector<8x256xbf16>
    %413 = arith.addf %406, %412 : vector<8x256xbf16>
    %414 = vector.extract_strided_slice %0 {offsets = [0, 59], sizes = [8, 1], strides = [1, 1]} : vector<8x64xi32> to vector<8x1xi32>
    %415 = vector.broadcast %414 : vector<8x1xi32> to vector<8x256xi32>
    %416 = arith.cmpi eq, %1, %415 : vector<8x256xi32>
    %417 = arith.extui %416 : vector<8x256xi1> to vector<8x256xi32>
    %418 = arith.sitofp %417 : vector<8x256xi32> to vector<8x256xf32>
    %419 = arith.truncf %418 : vector<8x256xf32> to vector<8x256xbf16>
    %420 = arith.addf %413, %419 : vector<8x256xbf16>
    %421 = vector.extract_strided_slice %0 {offsets = [0, 60], sizes = [8, 1], strides = [1, 1]} : vector<8x64xi32> to vector<8x1xi32>
    %422 = vector.broadcast %421 : vector<8x1xi32> to vector<8x256xi32>
    %423 = arith.cmpi eq, %1, %422 : vector<8x256xi32>
    %424 = arith.extui %423 : vector<8x256xi1> to vector<8x256xi32>
    %425 = arith.sitofp %424 : vector<8x256xi32> to vector<8x256xf32>
    %426 = arith.truncf %425 : vector<8x256xf32> to vector<8x256xbf16>
    %427 = arith.addf %420, %426 : vector<8x256xbf16>
    %428 = vector.extract_strided_slice %0 {offsets = [0, 61], sizes = [8, 1], strides = [1, 1]} : vector<8x64xi32> to vector<8x1xi32>
    %429 = vector.broadcast %428 : vector<8x1xi32> to vector<8x256xi32>
    %430 = arith.cmpi eq, %1, %429 : vector<8x256xi32>
    %431 = arith.extui %430 : vector<8x256xi1> to vector<8x256xi32>
    %432 = arith.sitofp %431 : vector<8x256xi32> to vector<8x256xf32>
    %433 = arith.truncf %432 : vector<8x256xf32> to vector<8x256xbf16>
    %434 = arith.addf %427, %433 : vector<8x256xbf16>
    %435 = vector.extract_strided_slice %0 {offsets = [0, 62], sizes = [8, 1], strides = [1, 1]} : vector<8x64xi32> to vector<8x1xi32>
    %436 = vector.broadcast %435 : vector<8x1xi32> to vector<8x256xi32>
    %437 = arith.cmpi eq, %1, %436 : vector<8x256xi32>
    %438 = arith.extui %437 : vector<8x256xi1> to vector<8x256xi32>
    %439 = arith.sitofp %438 : vector<8x256xi32> to vector<8x256xf32>
    %440 = arith.truncf %439 : vector<8x256xf32> to vector<8x256xbf16>
    %441 = arith.addf %434, %440 : vector<8x256xbf16>
    %442 = vector.extract_strided_slice %0 {offsets = [0, 63], sizes = [8, 1], strides = [1, 1]} : vector<8x64xi32> to vector<8x1xi32>
    %443 = vector.broadcast %442 : vector<8x1xi32> to vector<8x256xi32>
    %444 = arith.cmpi eq, %1, %443 : vector<8x256xi32>
    %445 = arith.extui %444 : vector<8x256xi1> to vector<8x256xi32>
    %446 = arith.sitofp %445 : vector<8x256xi32> to vector<8x256xf32>
    %447 = arith.truncf %446 : vector<8x256xf32> to vector<8x256xbf16>
    %448 = arith.addf %441, %447 : vector<8x256xbf16>
    %c0_1 = arith.constant 0 : index
    %c0_2 = arith.constant 0 : index
    %449 = vector.load %arg2[%c0_1, %c0_2] : memref<256x128xbf16, #tpu.memory_space<vmem>>, vector<256x128xbf16>
    %cst = arith.constant dense<0.000000e+00> : vector<8x128xf32>
    %450 = tpu.matmul %448, %449, %cst {dimension_numbers = #tpu.dot_dimension_numbers<[1], [0], [0], [1], [0, 0, 1, 1], [], []>} : vector<8x256xbf16>, vector<256x128xbf16>, vector<8x128xf32> -> vector<8x128xf32>
    %451 = vector.extract_strided_slice %448 {offsets = [0, 0], sizes = [8, 1], strides = [1, 1]} : vector<8x256xbf16> to vector<8x1xbf16>
    %452 = arith.extf %451 : vector<8x1xbf16> to vector<8x1xf32>
    %cst_3 = arith.constant 6.400000e+01 : f32
    %453 = vector.broadcast %cst_3 : f32 to vector<8x1xf32>
    %454 = arith.subf %453, %452 : vector<8x1xf32>
    %cst_4 = arith.constant 1.000000e+00 : f32
    %455 = vector.broadcast %cst_4 : f32 to vector<8x1xf32>
    %456 = arith.maximumf %454, %455 : vector<8x1xf32>
    %457 = tpu.reciprocal %456 : vector<8x1xf32> -> vector<8x1xf32>
    %458 = vector.broadcast %457 : vector<8x1xf32> to vector<8x128xf32>
    %459 = arith.mulf %450, %458 : vector<8x128xf32>
    %c0_5 = arith.constant 0 : index
    %c0_6 = arith.constant 0 : index
    %460 = vector.load %arg3[%c0_5, %c0_6] : memref<8x128xf32, #tpu.memory_space<vmem>>, vector<8x128xf32>
    tpu.vector_store %arg3[%c0_5, %c0_6], %459 {strides = array<i32>} : memref<8x128xf32, #tpu.memory_space<vmem>>, vector<8x128xf32>,
    return
  }
  func.func @transform_0(%arg0: i32) -> (i32, i32) {
    %c0_i32 = arith.constant 0 : i32
    %c0_i32_0 = arith.constant 0 : i32
    return %arg0, %c0_i32 : i32, i32
  }
  func.func @transform_1(%arg0: i32) -> (i32, i32) {
    %c0_i32 = arith.constant 0 : i32
    %c0_i32_0 = arith.constant 0 : i32
    %c0_i32_1 = arith.constant 0 : i32
    return %c0_i32, %c0_i32_0 : i32, i32
  }
  func.func @transform_2(%arg0: i32) -> (i32, i32) {
    %c0_i32 = arith.constant 0 : i32
    %c0_i32_0 = arith.constant 0 : i32
    return %arg0, %c0_i32 : i32, i32
  }
}

</mosaic_0001>

<llo_original>
// kernel: tpu_custom_call.1
$region0: #{tpu_custom_call.1}
  #allocation0 [shape = 'u32[]', space=smem, size = 0x4, offset = 0x4, fixed_abs, tag = 'smem constant byte address 0x4 - core index']
  #allocation1 [shape = 'u32[144,128]{1,0:T(1,128)}', space=vmem, size = 0x12000, scoped, tag = 'internal scratch']
  %s0 = inlined_call_operand.hbm [shape: s32[8,64], index: 0, kind: input, shape index: {}]
  %s1 = inlined_call_operand.hbm [shape: bf16[256,128], index: 1, kind: input, shape index: {}]
  %s2 = inlined_call_operand.hbm [shape: f32[8,128], index: 2, kind: output, shape index: {}]
  %s3 = sld [smem:[#allocation0]]
  $region26: #{tpu_custom_call.1} parent=0
    _
  %s5 = ssub.s32 1, %s3
  %s6 = scalar_select 0, %s5, %s3
  $region1: #{tpu_custom_call.1} parent=0
    #allocation2 [shape = 'u8[4096]{0}', space=vmem, size = 0x1000, scoped, tag = 'input window, operand 0, single buffered']
    #allocation3 [shape = 's32[1]{0}', space=sflag, size = 0x4, scoped, tag = 'scoped memory for tpu_custom_call.1']
    #allocation4 [shape = 's32[1]{0}', space=sflag, size = 0x4, scoped, tag = 'scoped memory for tpu_custom_call.1']
    #allocation5 [shape = 'u8[65536]{0}', space=vmem, size = 0x10000, scoped, tag = 'input window, operand 1, single buffered']
    #allocation6 [shape = 's32[1]{0}', space=sflag, size = 0x4, scoped, tag = 'scoped memory for tpu_custom_call.1']
    #allocation7 [shape = 'u8[4096]{0}', space=vmem, size = 0x1000, scoped, tag = 'output window, operand 0, single buffered']
    %7 = vsyncpa [#allocation3], 0
    %8 = vsyncpa [#allocation6], 0
    %9 = vsyncpa [#allocation4], 0
    // Predicated region
    $region2: #{tpu_custom_call.1} parent=1 // pred_check
      _
    $region3: #{tpu_custom_call.1} parent=1 // pred_check_branch
      %11 = sbr.rel (0) target = $region5
    $region4: #{tpu_custom_call.1} parent=1 // pred_region
      %s13 = ssub.s32 128, 128
      %14 = vsyncadd [#allocation3], %s13
      %s16 = sshll.u32 [#allocation2], 4
      %s17 = int_to_ptr.vmem [resolvable:$true] %s16
      %19 = dma.hbm_to_vmem [thread:$0]  %s0, 128, %s17, [#allocation3]
    $region5: #{tpu_custom_call.1} parent=1 // pred_fallthru
      _
    // Predicated region
    $region6: #{tpu_custom_call.1} parent=1 // pred_check
      _
    $region7: #{tpu_custom_call.1} parent=1 // pred_check_branch
      %21 = sbr.rel (0) target = $region9
    $region8: #{tpu_custom_call.1} parent=1 // pred_region
      %s23 = ssub.s32 2048, 2048
      %24 = vsyncadd [#allocation6], %s23
      %s25 = sshll.u32 [#allocation5], 4
      %s26 = int_to_ptr.vmem [resolvable:$true] %s25
      %31 = dma.hbm_to_vmem [thread:$0]  %s1, 2048, %s26, [#allocation6], 64, 64, 4
    $region9: #{tpu_custom_call.1} parent=1 // pred_fallthru
      _
    // Predicated region
    $region10: #{tpu_custom_call.1} parent=1 // pred_check
      _
    $region11: #{tpu_custom_call.1} parent=1 // pred_check_branch
      %33 = sbr.rel (0) target = $region13
    $region12: #{tpu_custom_call.1} parent=1 // pred_region
      %34 = dma.done [#allocation3], 128
    $region13: #{tpu_custom_call.1} parent=1 // pred_fallthru
      _
    // Predicated region
    $region14: #{tpu_custom_call.1} parent=1 // pred_check
      _
    $region15: #{tpu_custom_call.1} parent=1 // pred_check_branch
      %36 = sbr.rel (0) target = $region17
    $region16: #{tpu_custom_call.1} parent=1 // pred_region
      %37 = dma.done [#allocation6], 2048
    $region17: #{tpu_custom_call.1} parent=1 // pred_fallthru
      _
    %v39 = vld [vmem:[#allocation2] sm:$0xff]
    %v40 = vlaneseq
    %v41 = vand.u32 %v40, 127
    %v42 = vadd.s32 %v41, 128
    %43 = vset.pattern.permute.xlu0 0
    %44 = vperm.xlu0 %43, %v39
    %v45 = vpop.permute.xlu0 %44
    %vm46 = vcmp.eq.s32.totalorder %v41, %v45
    %vm47 = vcmp.eq.s32.totalorder %v42, %v45
    %v48 = vsel %vm46, 1, 0
    %v49 = vsel %vm47, 1, 0
    %v50 = vcvt.s32.f32 %v48
    %v51 = vcvt.s32.f32 %v49
    %v52 = vpack.c.bf16 %v50, %v50
    %v53 = vpack.c.bf16 %v51, %v51
    %54 = vset.pattern.permute.xlu0 1
    %55 = vperm.xlu0 %54, %v39
    %v56 = vpop.permute.xlu0 %55
    %vm57 = vcmp.eq.s32.totalorder %v41, %v56
    %vm58 = vcmp.eq.s32.totalorder %v42, %v56
    %v59 = vsel %vm57, 1, 0
    %v60 = vsel %vm58, 1, 0
    %v61 = vcvt.s32.f32 %v59
    %v62 = vcvt.s32.f32 %v60
    %v63 = vpack.c.bf16 %v61, %v61
    %v64 = vpack.c.bf16 %v62, %v62
    %v65 = vadd.bf16 %v52, %v63
    %v66 = vadd.bf16 %v53, %v64
    %67 = vset.pattern.permute.xlu0 2
    %68 = vperm.xlu0 %67, %v39
    %v69 = vpop.permute.xlu0 %68
    %vm70 = vcmp.eq.s32.totalorder %v41, %v69
    %vm71 = vcmp.eq.s32.totalorder %v42, %v69
    %v72 = vsel %vm70, 1, 0
    %v73 = vsel %vm71, 1, 0
    %v74 = vcvt.s32.f32 %v72
    %v75 = vcvt.s32.f32 %v73
    %v76 = vpack.c.bf16 %v74, %v74
    %v77 = vpack.c.bf16 %v75, %v75
    %v78 = vadd.bf16 %v65, %v76
    %v79 = vadd.bf16 %v66, %v77
    %80 = vset.pattern.permute.xlu0 3
    %81 = vperm.xlu0 %80, %v39
    %v82 = vpop.permute.xlu0 %81
    %vm83 = vcmp.eq.s32.totalorder %v41, %v82
    %vm84 = vcmp.eq.s32.totalorder %v42, %v82
    %v85 = vsel %vm83, 1, 0
    %v86 = vsel %vm84, 1, 0
    %v87 = vcvt.s32.f32 %v85
    %v88 = vcvt.s32.f32 %v86
    %v89 = vpack.c.bf16 %v87, %v87
    %v90 = vpack.c.bf16 %v88, %v88
    %v91 = vadd.bf16 %v78, %v89
    %v92 = vadd.bf16 %v79, %v90
    %93 = vset.pattern.permute.xlu0 4
    %94 = vperm.xlu0 %93, %v39
    %v95 = vpop.permute.xlu0 %94
    %vm96 = vcmp.eq.s32.totalorder %v41, %v95
    %vm97 = vcmp.eq.s32.totalorder %v42, %v95
    %v98 = vsel %vm96, 1, 0
    %v99 = vsel %vm97, 1, 0
    %v100 = vcvt.s32.f32 %v98
    %v101 = vcvt.s32.f32 %v99
    %v102 = vpack.c.bf16 %v100, %v100
    %v103 = vpack.c.bf16 %v101, %v101
    %v104 = vadd.bf16 %v91, %v102
    %v105 = vadd.bf16 %v92, %v103
    %106 = vset.pattern.permute.xlu0 5
    %107 = vperm.xlu0 %106, %v39
    %v108 = vpop.permute.xlu0 %107
    %vm109 = vcmp.eq.s32.totalorder %v41, %v108
    %vm110 = vcmp.eq.s32.totalorder %v42, %v108
    %v111 = vsel %vm109, 1, 0
    %v112 = vsel %vm110, 1, 0
    %v113 = vcvt.s32.f32 %v111
    %v114 = vcvt.s32.f32 %v112
    %v115 = vpack.c.bf16 %v113, %v113
    %v116 = vpack.c.bf16 %v114, %v114
    %v117 = vadd.bf16 %v104, %v115
    %v118 = vadd.bf16 %v105, %v116
    %119 = vset.pattern.permute.xlu0 6
    %120 = vperm.xlu0 %119, %v39
    %v121 = vpop.permute.xlu0 %120
    %vm122 = vcmp.eq.s32.totalorder %v41, %v121
    %vm123 = vcmp.eq.s32.totalorder %v42, %v121
    %v124 = vsel %vm122, 1, 0
    %v125 = vsel %vm123, 1, 0
    %v126 = vcvt.s32.f32 %v124
    %v127 = vcvt.s32.f32 %v125
    %v128 = vpack.c.bf16 %v126, %v126
    %v129 = vpack.c.bf16 %v127, %v127
    %v130 = vadd.bf16 %v117, %v128
    %v131 = vadd.bf16 %v118, %v129
    %132 = vset.pattern.permute.xlu0 7
    %133 = vperm.xlu0 %132, %v39
    %v134 = vpop.permute.xlu0 %133
    %vm135 = vcmp.eq.s32.totalorder %v41, %v134
    %vm136 = vcmp.eq.s32.totalorder %v42, %v134
    %v137 = vsel %vm135, 1, 0
    %v138 = vsel %vm136, 1, 0
    %v139 = vcvt.s32.f32 %v137
    %v140 = vcvt.s32.f32 %v138
    %v141 = vpack.c.bf16 %v139, %v139
    %v142 = vpack.c.bf16 %v140, %v140
    %v143 = vadd.bf16 %v130, %v141
    %v144 = vadd.bf16 %v131, %v142
    %145 = vset.pattern.permute.xlu0 8
    %146 = vperm.xlu0 %145, %v39
    %v147 = vpop.permute.xlu0 %146
    %vm148 = vcmp.eq.s32.totalorder %v41, %v147
    %vm149 = vcmp.eq.s32.totalorder %v42, %v147
    %v150 = vsel %vm148, 1, 0
    %v151 = vsel %vm149, 1, 0
    %v152 = vcvt.s32.f32 %v150
    %v153 = vcvt.s32.f32 %v151
    %v154 = vpack.c.bf16 %v152, %v152
    %v155 = vpack.c.bf16 %v153, %v153
    %v156 = vadd.bf16 %v143, %v154
    %v157 = vadd.bf16 %v144, %v155
    %158 = vset.pattern.permute.xlu0 9
    %159 = vperm.xlu0 %158, %v39
    %v160 = vpop.permute.xlu0 %159
    %vm161 = vcmp.eq.s32.totalorder %v41, %v160
    %vm162 = vcmp.eq.s32.totalorder %v42, %v160
    %v163 = vsel %vm161, 1, 0
    %v164 = vsel %vm162, 1, 0
    %v165 = vcvt.s32.f32 %v163
    %v166 = vcvt.s32.f32 %v164
    %v167 = vpack.c.bf16 %v165, %v165
    %v168 = vpack.c.bf16 %v166, %v166
    %v169 = vadd.bf16 %v156, %v167
    %v170 = vadd.bf16 %v157, %v168
    %171 = vset.pattern.permute.xlu0 10
    %172 = vperm.xlu0 %171, %v39
    %v173 = vpop.permute.xlu0 %172
    %vm174 = vcmp.eq.s32.totalorder %v41, %v173
    %vm175 = vcmp.eq.s32.totalorder %v42, %v173
    %v176 = vsel %vm174, 1, 0
    %v177 = vsel %vm175, 1, 0
    %v178 = vcvt.s32.f32 %v176
    %v179 = vcvt.s32.f32 %v177
    %v180 = vpack.c.bf16 %v178, %v178
    %v181 = vpack.c.bf16 %v179, %v179
    %v182 = vadd.bf16 %v169, %v180
    %v183 = vadd.bf16 %v170, %v181
    %184 = vset.pattern.permute.xlu0 11
    %185 = vperm.xlu0 %184, %v39
    %v186 = vpop.permute.xlu0 %185
    %vm187 = vcmp.eq.s32.totalorder %v41, %v186
    %vm188 = vcmp.eq.s32.totalorder %v42, %v186
    %v189 = vsel %vm187, 1, 0
    %v190 = vsel %vm188, 1, 0
    %v191 = vcvt.s32.f32 %v189
    %v192 = vcvt.s32.f32 %v190
    %v193 = vpack.c.bf16 %v191, %v191
    %v194 = vpack.c.bf16 %v192, %v192
    %v195 = vadd.bf16 %v182, %v193
    %v196 = vadd.bf16 %v183, %v194
    %197 = vset.pattern.permute.xlu0 12
    %198 = vperm.xlu0 %197, %v39
    %v199 = vpop.permute.xlu0 %198
    %vm200 = vcmp.eq.s32.totalorder %v41, %v199
    %vm201 = vcmp.eq.s32.totalorder %v42, %v199
    %v202 = vsel %vm200, 1, 0
    %v203 = vsel %vm201, 1, 0
    %v204 = vcvt.s32.f32 %v202
    %v205 = vcvt.s32.f32 %v203
    %v206 = vpack.c.bf16 %v204, %v204
    %v207 = vpack.c.bf16 %v205, %v205
    %v208 = vadd.bf16 %v195, %v206
    %v209 = vadd.bf16 %v196, %v207
    %210 = vset.pattern.permute.xlu0 13
    %211 = vperm.xlu0 %210, %v39
    %v212 = vpop.permute.xlu0 %211
    %vm213 = vcmp.eq.s32.totalorder %v41, %v212
    %vm214 = vcmp.eq.s32.totalorder %v42, %v212
    %v215 = vsel %vm213, 1, 0
    %v216 = vsel %vm214, 1, 0
    %v217 = vcvt.s32.f32 %v215
    %v218 = vcvt.s32.f32 %v216
    %v219 = vpack.c.bf16 %v217, %v217
    %v220 = vpack.c.bf16 %v218, %v218
    %v221 = vadd.bf16 %v208, %v219
    %v222 = vadd.bf16 %v209, %v220
    %223 = vset.pattern.permute.xlu0 14
    %224 = vperm.xlu0 %223, %v39
    %v225 = vpop.permute.xlu0 %224
    %vm226 = vcmp.eq.s32.totalorder %v41, %v225
    %vm227 = vcmp.eq.s32.totalorder %v42, %v225
    %v228 = vsel %vm226, 1, 0
    %v229 = vsel %vm227, 1, 0
    %v230 = vcvt.s32.f32 %v228
    %v231 = vcvt.s32.f32 %v229
    %v232 = vpack.c.bf16 %v230, %v230
    %v233 = vpack.c.bf16 %v231, %v231
    %v234 = vadd.bf16 %v221, %v232
    %v235 = vadd.bf16 %v222, %v233
    %236 = vset.pattern.permute.xlu0 15
    %237 = vperm.xlu0 %236, %v39
    %v238 = vpop.permute.xlu0 %237
    %vm239 = vcmp.eq.s32.totalorder %v41, %v238
    %vm240 = vcmp.eq.s32.totalorder %v42, %v238
    %v241 = vsel %vm239, 1, 0
    %v242 = vsel %vm240, 1, 0
    %v243 = vcvt.s32.f32 %v241
    %v244 = vcvt.s32.f32 %v242
    %v245 = vpack.c.bf16 %v243, %v243
    %v246 = vpack.c.bf16 %v244, %v244
    %v247 = vadd.bf16 %v234, %v245
    %v248 = vadd.bf16 %v235, %v246
    %249 = vset.pattern.permute.xlu0 16
    %250 = vperm.xlu0 %249, %v39
    %v251 = vpop.permute.xlu0 %250
    %vm252 = vcmp.eq.s32.totalorder %v41, %v251
    %vm253 = vcmp.eq.s32.totalorder %v42, %v251
    %v254 = vsel %vm252, 1, 0
    %v255 = vsel %vm253, 1, 0
    %v256 = vcvt.s32.f32 %v254
    %v257 = vcvt.s32.f32 %v255
    %v258 = vpack.c.bf16 %v256, %v256
    %v259 = vpack.c.bf16 %v257, %v257
    %v260 = vadd.bf16 %v247, %v258
    %v261 = vadd.bf16 %v248, %v259
    %262 = vset.pattern.permute.xlu0 17
    %263 = vperm.xlu0 %262, %v39
    %v264 = vpop.permute.xlu0 %263
    %vm265 = vcmp.eq.s32.totalorder %v41, %v264
    %vm266 = vcmp.eq.s32.totalorder %v42, %v264
    %v267 = vsel %vm265, 1, 0
    %v268 = vsel %vm266, 1, 0
    %v269 = vcvt.s32.f32 %v267
    %v270 = vcvt.s32.f32 %v268
    %v271 = vpack.c.bf16 %v269, %v269
    %v272 = vpack.c.bf16 %v270, %v270
    %v273 = vadd.bf16 %v260, %v271
    %v274 = vadd.bf16 %v261, %v272
    %275 = vset.pattern.permute.xlu0 18
    %276 = vperm.xlu0 %275, %v39
    %v277 = vpop.permute.xlu0 %276
    %vm278 = vcmp.eq.s32.totalorder %v41, %v277
    %vm279 = vcmp.eq.s32.totalorder %v42, %v277
    %v280 = vsel %vm278, 1, 0
    %v281 = vsel %vm279, 1, 0
    %v282 = vcvt.s32.f32 %v280
    %v283 = vcvt.s32.f32 %v281
    %v284 = vpack.c.bf16 %v282, %v282
    %v285 = vpack.c.bf16 %v283, %v283
    %v286 = vadd.bf16 %v273, %v284
    %v287 = vadd.bf16 %v274, %v285
    %288 = vset.pattern.permute.xlu0 19
    %289 = vperm.xlu0 %288, %v39
    %v290 = vpop.permute.xlu0 %289
    %vm291 = vcmp.eq.s32.totalorder %v41, %v290
    %vm292 = vcmp.eq.s32.totalorder %v42, %v290
    %v293 = vsel %vm291, 1, 0
    %v294 = vsel %vm292, 1, 0
    %v295 = vcvt.s32.f32 %v293
    %v296 = vcvt.s32.f32 %v294
    %v297 = vpack.c.bf16 %v295, %v295
    %v298 = vpack.c.bf16 %v296, %v296
    %v299 = vadd.bf16 %v286, %v297
    %v300 = vadd.bf16 %v287, %v298
    %301 = vset.pattern.permute.xlu0 20
    %302 = vperm.xlu0 %301, %v39
    %v303 = vpop.permute.xlu0 %302
    %vm304 = vcmp.eq.s32.totalorder %v41, %v303
    %vm305 = vcmp.eq.s32.totalorder %v42, %v303
    %v306 = vsel %vm304, 1, 0
    %v307 = vsel %vm305, 1, 0
    %v308 = vcvt.s32.f32 %v306
    %v309 = vcvt.s32.f32 %v307
    %v310 = vpack.c.bf16 %v308, %v308
    %v311 = vpack.c.bf16 %v309, %v309
    %v312 = vadd.bf16 %v299, %v310
    %v313 = vadd.bf16 %v300, %v311
    %314 = vset.pattern.permute.xlu0 21
    %315 = vperm.xlu0 %314, %v39
    %v316 = vpop.permute.xlu0 %315
    %vm317 = vcmp.eq.s32.totalorder %v41, %v316
    %vm318 = vcmp.eq.s32.totalorder %v42, %v316
    %v319 = vsel %vm317, 1, 0
    %v320 = vsel %vm318, 1, 0
    %v321 = vcvt.s32.f32 %v319
    %v322 = vcvt.s32.f32 %v320
    %v323 = vpack.c.bf16 %v321, %v321
    %v324 = vpack.c.bf16 %v322, %v322
    %v325 = vadd.bf16 %v312, %v323
    %v326 = vadd.bf16 %v313, %v324
    %327 = vset.pattern.permute.xlu0 22
    %328 = vperm.xlu0 %327, %v39
    %v329 = vpop.permute.xlu0 %328
    %vm330 = vcmp.eq.s32.totalorder %v41, %v329
    %vm331 = vcmp.eq.s32.totalorder %v42, %v329
    %v332 = vsel %vm330, 1, 0
    %v333 = vsel %vm331, 1, 0
    %v334 = vcvt.s32.f32 %v332
    %v335 = vcvt.s32.f32 %v333
    %v336 = vpack.c.bf16 %v334, %v334
    %v337 = vpack.c.bf16 %v335, %v335
    %v338 = vadd.bf16 %v325, %v336
    %v339 = vadd.bf16 %v326, %v337
    %340 = vset.pattern.permute.xlu0 23
    %341 = vperm.xlu0 %340, %v39
    %v342 = vpop.permute.xlu0 %341
    %vm343 = vcmp.eq.s32.totalorder %v41, %v342
    %vm344 = vcmp.eq.s32.totalorder %v42, %v342
    %v345 = vsel %vm343, 1, 0
    %v346 = vsel %vm344, 1, 0
    %v347 = vcvt.s32.f32 %v345
    %v348 = vcvt.s32.f32 %v346
    %v349 = vpack.c.bf16 %v347, %v347
    %v350 = vpack.c.bf16 %v348, %v348
    %v351 = vadd.bf16 %v338, %v349
    %v352 = vadd.bf16 %v339, %v350
    %353 = vset.pattern.permute.xlu0 24
    %354 = vperm.xlu0 %353, %v39
    %v355 = vpop.permute.xlu0 %354
    %vm356 = vcmp.eq.s32.totalorder %v41, %v355
    %vm357 = vcmp.eq.s32.totalorder %v42, %v355
    %v358 = vsel %vm356, 1, 0
    %v359 = vsel %vm357, 1, 0
    %v360 = vcvt.s32.f32 %v358
    %v361 = vcvt.s32.f32 %v359
    %v362 = vpack.c.bf16 %v360, %v360
    %v363 = vpack.c.bf16 %v361, %v361
    %v364 = vadd.bf16 %v351, %v362
    %v365 = vadd.bf16 %v352, %v363
    %366 = vset.pattern.permute.xlu0 25
    %367 = vperm.xlu0 %366, %v39
    %v368 = vpop.permute.xlu0 %367
    %vm369 = vcmp.eq.s32.totalorder %v41, %v368
    %vm370 = vcmp.eq.s32.totalorder %v42, %v368
    %v371 = vsel %vm369, 1, 0
    %v372 = vsel %vm370, 1, 0
    %v373 = vcvt.s32.f32 %v371
    %v374 = vcvt.s32.f32 %v372
    %v375 = vpack.c.bf16 %v373, %v373
    %v376 = vpack.c.bf16 %v374, %v374
    %v377 = vadd.bf16 %v364, %v375
    %v378 = vadd.bf16 %v365, %v376
    %379 = vset.pattern.permute.xlu0 26
    %380 = vperm.xlu0 %379, %v39
    %v381 = vpop.permute.xlu0 %380
    %vm382 = vcmp.eq.s32.totalorder %v41, %v381
    %vm383 = vcmp.eq.s32.totalorder %v42, %v381
    %v384 = vsel %vm382, 1, 0
    %v385 = vsel %vm383, 1, 0
    %v386 = vcvt.s32.f32 %v384
    %v387 = vcvt.s32.f32 %v385
    %v388 = vpack.c.bf16 %v386, %v386
    %v389 = vpack.c.bf16 %v387, %v387
    %v390 = vadd.bf16 %v377, %v388
    %v391 = vadd.bf16 %v378, %v389
    %392 = vset.pattern.permute.xlu0 27
    %393 = vperm.xlu0 %392, %v39
    %v394 = vpop.permute.xlu0 %393
    %vm395 = vcmp.eq.s32.totalorder %v41, %v394
    %vm396 = vcmp.eq.s32.totalorder %v42, %v394
    %v397 = vsel %vm395, 1, 0
    %v398 = vsel %vm396, 1, 0
    %v399 = vcvt.s32.f32 %v397
    %v400 = vcvt.s32.f32 %v398
    %v401 = vpack.c.bf16 %v399, %v399
    %v402 = vpack.c.bf16 %v400, %v400
    %v403 = vadd.bf16 %v390, %v401
    %v404 = vadd.bf16 %v391, %v402
    %405 = vset.pattern.permute.xlu0 28
    %406 = vperm.xlu0 %405, %v39
    %v407 = vpop.permute.xlu0 %406
    %vm408 = vcmp.eq.s32.totalorder %v41, %v407
    %vm409 = vcmp.eq.s32.totalorder %v42, %v407
    %v410 = vsel %vm408, 1, 0
    %v411 = vsel %vm409, 1, 0
    %v412 = vcvt.s32.f32 %v410
    %v413 = vcvt.s32.f32 %v411
    %v414 = vpack.c.bf16 %v412, %v412
    %v415 = vpack.c.bf16 %v413, %v413
    %v416 = vadd.bf16 %v403, %v414
    %v417 = vadd.bf16 %v404, %v415
    %418 = vset.pattern.permute.xlu0 29
    %419 = vperm.xlu0 %418, %v39
    %v420 = vpop.permute.xlu0 %419
    %vm421 = vcmp.eq.s32.totalorder %v41, %v420
    %vm422 = vcmp.eq.s32.totalorder %v42, %v420
    %v423 = vsel %vm421, 1, 0
    %v424 = vsel %vm422, 1, 0
    %v425 = vcvt.s32.f32 %v423
    %v426 = vcvt.s32.f32 %v424
    %v427 = vpack.c.bf16 %v425, %v425
    %v428 = vpack.c.bf16 %v426, %v426
    %v429 = vadd.bf16 %v416, %v427
    %v430 = vadd.bf16 %v417, %v428
    %431 = vset.pattern.permute.xlu0 30
    %432 = vperm.xlu0 %431, %v39
    %v433 = vpop.permute.xlu0 %432
    %vm434 = vcmp.eq.s32.totalorder %v41, %v433
    %vm435 = vcmp.eq.s32.totalorder %v42, %v433
    %v436 = vsel %vm434, 1, 0
    %v437 = vsel %vm435, 1, 0
    %v438 = vcvt.s32.f32 %v436
    %v439 = vcvt.s32.f32 %v437
    %v440 = vpack.c.bf16 %v438, %v438
    %v441 = vpack.c.bf16 %v439, %v439
    %v442 = vadd.bf16 %v429, %v440
    %v443 = vadd.bf16 %v430, %v441
    %444 = vset.pattern.permute.xlu0 31
    %445 = vperm.xlu0 %444, %v39
    %v446 = vpop.permute.xlu0 %445
    %vm447 = vcmp.eq.s32.totalorder %v41, %v446
    %vm448 = vcmp.eq.s32.totalorder %v42, %v446
    %v449 = vsel %vm447, 1, 0
    %v450 = vsel %vm448, 1, 0
    %v451 = vcvt.s32.f32 %v449
    %v452 = vcvt.s32.f32 %v450
    %v453 = vpack.c.bf16 %v451, %v451
    %v454 = vpack.c.bf16 %v452, %v452
    %v455 = vadd.bf16 %v442, %v453
    %v456 = vadd.bf16 %v443, %v454
    %457 = vset.pattern.permute.xlu0 32
    %458 = vperm.xlu0 %457, %v39
    %v459 = vpop.permute.xlu0 %458
    %vm460 = vcmp.eq.s32.totalorder %v41, %v459
    %vm461 = vcmp.eq.s32.totalorder %v42, %v459
    %v462 = vsel %vm460, 1, 0
    %v463 = vsel %vm461, 1, 0
    %v464 = vcvt.s32.f32 %v462
    %v465 = vcvt.s32.f32 %v463
    %v466 = vpack.c.bf16 %v464, %v464
    %v467 = vpack.c.bf16 %v465, %v465
    %v468 = vadd.bf16 %v455, %v466
    %v469 = vadd.bf16 %v456, %v467
    %470 = vset.pattern.permute.xlu0 33
    %471 = vperm.xlu0 %470, %v39
    %v472 = vpop.permute.xlu0 %471
    %vm473 = vcmp.eq.s32.totalorder %v41, %v472
    %vm474 = vcmp.eq.s32.totalorder %v42, %v472
    %v475 = vsel %vm473, 1, 0
    %v476 = vsel %vm474, 1, 0
    %v477 = vcvt.s32.f32 %v475
    %v478 = vcvt.s32.f32 %v476
    %v479 = vpack.c.bf16 %v477, %v477
    %v480 = vpack.c.bf16 %v478, %v478
    %v481 = vadd.bf16 %v468, %v479
    %v482 = vadd.bf16 %v469, %v480
    %483 = vset.pattern.permute.xlu0 34
    %484 = vperm.xlu0 %483, %v39
    %v485 = vpop.permute.xlu0 %484
    %vm486 = vcmp.eq.s32.totalorder %v41, %v485
    %vm487 = vcmp.eq.s32.totalorder %v42, %v485
    %v488 = vsel %vm486, 1, 0
    %v489 = vsel %vm487, 1, 0
    %v490 = vcvt.s32.f32 %v488
    %v491 = vcvt.s32.f32 %v489
    %v492 = vpack.c.bf16 %v490, %v490
    %v493 = vpack.c.bf16 %v491, %v491
    %v494 = vadd.bf16 %v481, %v492
    %v495 = vadd.bf16 %v482, %v493
    %496 = vset.pattern.permute.xlu0 35
    %497 = vperm.xlu0 %496, %v39
    %v498 = vpop.permute.xlu0 %497
    %vm499 = vcmp.eq.s32.totalorder %v41, %v498
    %vm500 = vcmp.eq.s32.totalorder %v42, %v498
    %v501 = vsel %vm499, 1, 0
    %v502 = vsel %vm500, 1, 0
    %v503 = vcvt.s32.f32 %v501
    %v504 = vcvt.s32.f32 %v502
    %v505 = vpack.c.bf16 %v503, %v503
    %v506 = vpack.c.bf16 %v504, %v504
    %v507 = vadd.bf16 %v494, %v505
    %v508 = vadd.bf16 %v495, %v506
    %509 = vset.pattern.permute.xlu0 36
    %510 = vperm.xlu0 %509, %v39
    %v511 = vpop.permute.xlu0 %510
    %vm512 = vcmp.eq.s32.totalorder %v41, %v511
    %vm513 = vcmp.eq.s32.totalorder %v42, %v511
    %v514 = vsel %vm512, 1, 0
    %v515 = vsel %vm513, 1, 0
    %v516 = vcvt.s32.f32 %v514
    %v517 = vcvt.s32.f32 %v515
    %v518 = vpack.c.bf16 %v516, %v516
    %v519 = vpack.c.bf16 %v517, %v517
    %v520 = vadd.bf16 %v507, %v518
    %v521 = vadd.bf16 %v508, %v519
    %522 = vset.pattern.permute.xlu0 37
    %523 = vperm.xlu0 %522, %v39
    %v524 = vpop.permute.xlu0 %523
    %vm525 = vcmp.eq.s32.totalorder %v41, %v524
    %vm526 = vcmp.eq.s32.totalorder %v42, %v524
    %v527 = vsel %vm525, 1, 0
    %v528 = vsel %vm526, 1, 0
    %v529 = vcvt.s32.f32 %v527
    %v530 = vcvt.s32.f32 %v528
    %v531 = vpack.c.bf16 %v529, %v529
    %v532 = vpack.c.bf16 %v530, %v530
    %v533 = vadd.bf16 %v520, %v531
    %v534 = vadd.bf16 %v521, %v532
    %535 = vset.pattern.permute.xlu0 38
    %536 = vperm.xlu0 %535, %v39
    %v537 = vpop.permute.xlu0 %536
    %vm538 = vcmp.eq.s32.totalorder %v41, %v537
    %vm539 = vcmp.eq.s32.totalorder %v42, %v537
    %v540 = vsel %vm538, 1, 0
    %v541 = vsel %vm539, 1, 0
    %v542 = vcvt.s32.f32 %v540
    %v543 = vcvt.s32.f32 %v541
    %v544 = vpack.c.bf16 %v542, %v542
    %v545 = vpack.c.bf16 %v543, %v543
    %v546 = vadd.bf16 %v533, %v544
    %v547 = vadd.bf16 %v534, %v545
    %548 = vset.pattern.permute.xlu0 39
    %549 = vperm.xlu0 %548, %v39
    %v550 = vpop.permute.xlu0 %549
    %vm551 = vcmp.eq.s32.totalorder %v41, %v550
    %vm552 = vcmp.eq.s32.totalorder %v42, %v550
    %v553 = vsel %vm551, 1, 0
    %v554 = vsel %vm552, 1, 0
    %v555 = vcvt.s32.f32 %v553
    %v556 = vcvt.s32.f32 %v554
    %v557 = vpack.c.bf16 %v555, %v555
    %v558 = vpack.c.bf16 %v556, %v556
    %v559 = vadd.bf16 %v546, %v557
    %v560 = vadd.bf16 %v547, %v558
    %561 = vset.pattern.permute.xlu0 40
    %562 = vperm.xlu0 %561, %v39
    %v563 = vpop.permute.xlu0 %562
    %vm564 = vcmp.eq.s32.totalorder %v41, %v563
    %vm565 = vcmp.eq.s32.totalorder %v42, %v563
    %v566 = vsel %vm564, 1, 0
    %v567 = vsel %vm565, 1, 0
    %v568 = vcvt.s32.f32 %v566
    %v569 = vcvt.s32.f32 %v567
    %v570 = vpack.c.bf16 %v568, %v568
    %v571 = vpack.c.bf16 %v569, %v569
    %v572 = vadd.bf16 %v559, %v570
    %v573 = vadd.bf16 %v560, %v571
    %574 = vset.pattern.permute.xlu0 41
    %575 = vperm.xlu0 %574, %v39
    %v576 = vpop.permute.xlu0 %575
    %vm577 = vcmp.eq.s32.totalorder %v41, %v576
    %vm578 = vcmp.eq.s32.totalorder %v42, %v576
    %v579 = vsel %vm577, 1, 0
    %v580 = vsel %vm578, 1, 0
    %v581 = vcvt.s32.f32 %v579
    %v582 = vcvt.s32.f32 %v580
    %v583 = vpack.c.bf16 %v581, %v581
    %v584 = vpack.c.bf16 %v582, %v582
    %v585 = vadd.bf16 %v572, %v583
    %v586 = vadd.bf16 %v573, %v584
    %587 = vset.pattern.permute.xlu0 42
    %588 = vperm.xlu0 %587, %v39
    %v589 = vpop.permute.xlu0 %588
    %vm590 = vcmp.eq.s32.totalorder %v41, %v589
    %vm591 = vcmp.eq.s32.totalorder %v42, %v589
    %v592 = vsel %vm590, 1, 0
    %v593 = vsel %vm591, 1, 0
    %v594 = vcvt.s32.f32 %v592
    %v595 = vcvt.s32.f32 %v593
    %v596 = vpack.c.bf16 %v594, %v594
    %v597 = vpack.c.bf16 %v595, %v595
    %v598 = vadd.bf16 %v585, %v596
    %v599 = vadd.bf16 %v586, %v597
    %600 = vset.pattern.permute.xlu0 43
    %601 = vperm.xlu0 %600, %v39
    %v602 = vpop.permute.xlu0 %601
    %vm603 = vcmp.eq.s32.totalorder %v41, %v602
    %vm604 = vcmp.eq.s32.totalorder %v42, %v602
    %v605 = vsel %vm603, 1, 0
    %v606 = vsel %vm604, 1, 0
    %v607 = vcvt.s32.f32 %v605
    %v608 = vcvt.s32.f32 %v606
    %v609 = vpack.c.bf16 %v607, %v607
    %v610 = vpack.c.bf16 %v608, %v608
    %v611 = vadd.bf16 %v598, %v609
    %v612 = vadd.bf16 %v599, %v610
    %613 = vset.pattern.permute.xlu0 44
    %614 = vperm.xlu0 %613, %v39
    %v615 = vpop.permute.xlu0 %614
    %vm616 = vcmp.eq.s32.totalorder %v41, %v615
    %vm617 = vcmp.eq.s32.totalorder %v42, %v615
    %v618 = vsel %vm616, 1, 0
    %v619 = vsel %vm617, 1, 0
    %v620 = vcvt.s32.f32 %v618
    %v621 = vcvt.s32.f32 %v619
    %v622 = vpack.c.bf16 %v620, %v620
    %v623 = vpack.c.bf16 %v621, %v621
    %v624 = vadd.bf16 %v611, %v622
    %v625 = vadd.bf16 %v612, %v623
    %626 = vset.pattern.permute.xlu0 45
    %627 = vperm.xlu0 %626, %v39
    %v628 = vpop.permute.xlu0 %627
    %vm629 = vcmp.eq.s32.totalorder %v41, %v628
    %vm630 = vcmp.eq.s32.totalorder %v42, %v628
    %v631 = vsel %vm629, 1, 0
    %v632 = vsel %vm630, 1, 0
    %v633 = vcvt.s32.f32 %v631
    %v634 = vcvt.s32.f32 %v632
    %v635 = vpack.c.bf16 %v633, %v633
    %v636 = vpack.c.bf16 %v634, %v634
    %v637 = vadd.bf16 %v624, %v635
    %v638 = vadd.bf16 %v625, %v636
    %639 = vset.pattern.permute.xlu0 46
    %640 = vperm.xlu0 %639, %v39
    %v641 = vpop.permute.xlu0 %640
    %vm642 = vcmp.eq.s32.totalorder %v41, %v641
    %vm643 = vcmp.eq.s32.totalorder %v42, %v641
    %v644 = vsel %vm642, 1, 0
    %v645 = vsel %vm643, 1, 0
    %v646 = vcvt.s32.f32 %v644
    %v647 = vcvt.s32.f32 %v645
    %v648 = vpack.c.bf16 %v646, %v646
    %v649 = vpack.c.bf16 %v647, %v647
    %v650 = vadd.bf16 %v637, %v648
    %v651 = vadd.bf16 %v638, %v649
    %652 = vset.pattern.permute.xlu0 47
    %653 = vperm.xlu0 %652, %v39
    %v654 = vpop.permute.xlu0 %653
    %vm655 = vcmp.eq.s32.totalorder %v41, %v654
    %vm656 = vcmp.eq.s32.totalorder %v42, %v654
    %v657 = vsel %vm655, 1, 0
    %v658 = vsel %vm656, 1, 0
    %v659 = vcvt.s32.f32 %v657
    %v660 = vcvt.s32.f32 %v658
    %v661 = vpack.c.bf16 %v659, %v659
    %v662 = vpack.c.bf16 %v660, %v660
    %v663 = vadd.bf16 %v650, %v661
    %v664 = vadd.bf16 %v651, %v662
    %665 = vset.pattern.permute.xlu0 48
    %666 = vperm.xlu0 %665, %v39
    %v667 = vpop.permute.xlu0 %666
    %vm668 = vcmp.eq.s32.totalorder %v41, %v667
    %vm669 = vcmp.eq.s32.totalorder %v42, %v667
    %v670 = vsel %vm668, 1, 0
    %v671 = vsel %vm669, 1, 0
    %v672 = vcvt.s32.f32 %v670
    %v673 = vcvt.s32.f32 %v671
    %v674 = vpack.c.bf16 %v672, %v672
    %v675 = vpack.c.bf16 %v673, %v673
    %v676 = vadd.bf16 %v663, %v674
    %v677 = vadd.bf16 %v664, %v675
    %678 = vset.pattern.permute.xlu0 49
    %679 = vperm.xlu0 %678, %v39
    %v680 = vpop.permute.xlu0 %679
    %vm681 = vcmp.eq.s32.totalorder %v41, %v680
    %vm682 = vcmp.eq.s32.totalorder %v42, %v680
    %v683 = vsel %vm681, 1, 0
    %v684 = vsel %vm682, 1, 0
    %v685 = vcvt.s32.f32 %v683
    %v686 = vcvt.s32.f32 %v684
    %v687 = vpack.c.bf16 %v685, %v685
    %v688 = vpack.c.bf16 %v686, %v686
    %v689 = vadd.bf16 %v676, %v687
    %v690 = vadd.bf16 %v677, %v688
    %691 = vset.pattern.permute.xlu0 50
    %692 = vperm.xlu0 %691, %v39
    %v693 = vpop.permute.xlu0 %692
    %vm694 = vcmp.eq.s32.totalorder %v41, %v693
    %vm695 = vcmp.eq.s32.totalorder %v42, %v693
    %v696 = vsel %vm694, 1, 0
    %v697 = vsel %vm695, 1, 0
    %v698 = vcvt.s32.f32 %v696
    %v699 = vcvt.s32.f32 %v697
    %v700 = vpack.c.bf16 %v698, %v698
    %v701 = vpack.c.bf16 %v699, %v699
    %v702 = vadd.bf16 %v689, %v700
    %v703 = vadd.bf16 %v690, %v701
    %704 = vset.pattern.permute.xlu0 51
    %705 = vperm.xlu0 %704, %v39
    %v706 = vpop.permute.xlu0 %705
    %vm707 = vcmp.eq.s32.totalorder %v41, %v706
    %vm708 = vcmp.eq.s32.totalorder %v42, %v706
    %v709 = vsel %vm707, 1, 0
    %v710 = vsel %vm708, 1, 0
    %v711 = vcvt.s32.f32 %v709
    %v712 = vcvt.s32.f32 %v710
    %v713 = vpack.c.bf16 %v711, %v711
    %v714 = vpack.c.bf16 %v712, %v712
    %v715 = vadd.bf16 %v702, %v713
    %v716 = vadd.bf16 %v703, %v714
    %717 = vset.pattern.permute.xlu0 52
    %718 = vperm.xlu0 %717, %v39
    %v719 = vpop.permute.xlu0 %718
    %vm720 = vcmp.eq.s32.totalorder %v41, %v719
    %vm721 = vcmp.eq.s32.totalorder %v42, %v719
    %v722 = vsel %vm720, 1, 0
    %v723 = vsel %vm721, 1, 0
    %v724 = vcvt.s32.f32 %v722
    %v725 = vcvt.s32.f32 %v723
    %v726 = vpack.c.bf16 %v724, %v724
    %v727 = vpack.c.bf16 %v725, %v725
    %v728 = vadd.bf16 %v715, %v726
    %v729 = vadd.bf16 %v716, %v727
    %730 = vset.pattern.permute.xlu0 53
    %731 = vperm.xlu0 %730, %v39
    %v732 = vpop.permute.xlu0 %731
    %vm733 = vcmp.eq.s32.totalorder %v41, %v732
    %vm734 = vcmp.eq.s32.totalorder %v42, %v732
    %v735 = vsel %vm733, 1, 0
    %v736 = vsel %vm734, 1, 0
    %v737 = vcvt.s32.f32 %v735
    %v738 = vcvt.s32.f32 %v736
    %v739 = vpack.c.bf16 %v737, %v737
    %v740 = vpack.c.bf16 %v738, %v738
    %v741 = vadd.bf16 %v728, %v739
    %v742 = vadd.bf16 %v729, %v740
    %743 = vset.pattern.permute.xlu0 54
    %744 = vperm.xlu0 %743, %v39
    %v745 = vpop.permute.xlu0 %744
    %vm746 = vcmp.eq.s32.totalorder %v41, %v745
    %vm747 = vcmp.eq.s32.totalorder %v42, %v745
    %v748 = vsel %vm746, 1, 0
    %v749 = vsel %vm747, 1, 0
    %v750 = vcvt.s32.f32 %v748
    %v751 = vcvt.s32.f32 %v749
    %v752 = vpack.c.bf16 %v750, %v750
    %v753 = vpack.c.bf16 %v751, %v751
    %v754 = vadd.bf16 %v741, %v752
    %v755 = vadd.bf16 %v742, %v753
    %756 = vset.pattern.permute.xlu0 55
    %757 = vperm.xlu0 %756, %v39
    %v758 = vpop.permute.xlu0 %757
    %vm759 = vcmp.eq.s32.totalorder %v41, %v758
    %vm760 = vcmp.eq.s32.totalorder %v42, %v758
    %v761 = vsel %vm759, 1, 0
    %v762 = vsel %vm760, 1, 0
    %v763 = vcvt.s32.f32 %v761
    %v764 = vcvt.s32.f32 %v762
    %v765 = vpack.c.bf16 %v763, %v763
    %v766 = vpack.c.bf16 %v764, %v764
    %v767 = vadd.bf16 %v754, %v765
    %v768 = vadd.bf16 %v755, %v766
    %769 = vset.pattern.permute.xlu0 56
    %770 = vperm.xlu0 %769, %v39
    %v771 = vpop.permute.xlu0 %770
    %vm772 = vcmp.eq.s32.totalorder %v41, %v771
    %vm773 = vcmp.eq.s32.totalorder %v42, %v771
    %v774 = vsel %vm772, 1, 0
    %v775 = vsel %vm773, 1, 0
    %v776 = vcvt.s32.f32 %v774
    %v777 = vcvt.s32.f32 %v775
    %v778 = vpack.c.bf16 %v776, %v776
    %v779 = vpack.c.bf16 %v777, %v777
    %v780 = vadd.bf16 %v767, %v778
    %v781 = vadd.bf16 %v768, %v779
    %782 = vset.pattern.permute.xlu0 57
    %783 = vperm.xlu0 %782, %v39
    %v784 = vpop.permute.xlu0 %783
    %vm785 = vcmp.eq.s32.totalorder %v41, %v784
    %vm786 = vcmp.eq.s32.totalorder %v42, %v784
    %v787 = vsel %vm785, 1, 0
    %v788 = vsel %vm786, 1, 0
    %v789 = vcvt.s32.f32 %v787
    %v790 = vcvt.s32.f32 %v788
    %v791 = vpack.c.bf16 %v789, %v789
    %v792 = vpack.c.bf16 %v790, %v790
    %v793 = vadd.bf16 %v780, %v791
    %v794 = vadd.bf16 %v781, %v792
    %795 = vset.pattern.permute.xlu0 58
    %796 = vperm.xlu0 %795, %v39
    %v797 = vpop.permute.xlu0 %796
    %vm798 = vcmp.eq.s32.totalorder %v41, %v797
    %vm799 = vcmp.eq.s32.totalorder %v42, %v797
    %v800 = vsel %vm798, 1, 0
    %v801 = vsel %vm799, 1, 0
    %v802 = vcvt.s32.f32 %v800
    %v803 = vcvt.s32.f32 %v801
    %v804 = vpack.c.bf16 %v802, %v802
    %v805 = vpack.c.bf16 %v803, %v803
    %v806 = vadd.bf16 %v793, %v804
    %v807 = vadd.bf16 %v794, %v805
    %808 = vset.pattern.permute.xlu0 59
    %809 = vperm.xlu0 %808, %v39
    %v810 = vpop.permute.xlu0 %809
    %vm811 = vcmp.eq.s32.totalorder %v41, %v810
    %vm812 = vcmp.eq.s32.totalorder %v42, %v810
    %v813 = vsel %vm811, 1, 0
    %v814 = vsel %vm812, 1, 0
    %v815 = vcvt.s32.f32 %v813
    %v816 = vcvt.s32.f32 %v814
    %v817 = vpack.c.bf16 %v815, %v815
    %v818 = vpack.c.bf16 %v816, %v816
    %v819 = vadd.bf16 %v806, %v817
    %v820 = vadd.bf16 %v807, %v818
    %821 = vset.pattern.permute.xlu0 60
    %822 = vperm.xlu0 %821, %v39
    %v823 = vpop.permute.xlu0 %822
    %vm824 = vcmp.eq.s32.totalorder %v41, %v823
    %vm825 = vcmp.eq.s32.totalorder %v42, %v823
    %v826 = vsel %vm824, 1, 0
    %v827 = vsel %vm825, 1, 0
    %v828 = vcvt.s32.f32 %v826
    %v829 = vcvt.s32.f32 %v827
    %v830 = vpack.c.bf16 %v828, %v828
    %v831 = vpack.c.bf16 %v829, %v829
    %v832 = vadd.bf16 %v819, %v830
    %v833 = vadd.bf16 %v820, %v831
    %834 = vset.pattern.permute.xlu0 61
    %835 = vperm.xlu0 %834, %v39
    %v836 = vpop.permute.xlu0 %835
    %vm837 = vcmp.eq.s32.totalorder %v41, %v836
    %vm838 = vcmp.eq.s32.totalorder %v42, %v836
    %v839 = vsel %vm837, 1, 0
    %v840 = vsel %vm838, 1, 0
    %v841 = vcvt.s32.f32 %v839
    %v842 = vcvt.s32.f32 %v840
    %v843 = vpack.c.bf16 %v841, %v841
    %v844 = vpack.c.bf16 %v842, %v842
    %v845 = vadd.bf16 %v832, %v843
    %v846 = vadd.bf16 %v833, %v844
    %847 = vset.pattern.permute.xlu0 62
    %848 = vperm.xlu0 %847, %v39
    %v849 = vpop.permute.xlu0 %848
    %vm850 = vcmp.eq.s32.totalorder %v41, %v849
    %vm851 = vcmp.eq.s32.totalorder %v42, %v849
    %v852 = vsel %vm850, 1, 0
    %v853 = vsel %vm851, 1, 0
    %v854 = vcvt.s32.f32 %v852
    %v855 = vcvt.s32.f32 %v853
    %v856 = vpack.c.bf16 %v854, %v854
    %v857 = vpack.c.bf16 %v855, %v855
    %v858 = vadd.bf16 %v845, %v856
    %v859 = vadd.bf16 %v846, %v857
    %860 = vset.pattern.permute.xlu0 63
    %861 = vperm.xlu0 %860, %v39
    %v862 = vpop.permute.xlu0 %861
    %vm863 = vcmp.eq.s32.totalorder %v41, %v862
    %vm864 = vcmp.eq.s32.totalorder %v42, %v862
    %v865 = vsel %vm863, 1, 0
    %v866 = vsel %vm864, 1, 0
    %v867 = vcvt.s32.f32 %v865
    %v868 = vcvt.s32.f32 %v866
    %v869 = vpack.c.bf16 %v867, %v867
    %v870 = vpack.c.bf16 %v868, %v868
    %v871 = vadd.bf16 %v858, %v869
    %v872 = vadd.bf16 %v859, %v870
    %v873 = vld [vmem:[#allocation5] sm:$0xf]
    %v874 = vld [vmem:[#allocation5 + $0x4] sm:$0xf]
    %v875 = vld [vmem:[#allocation5 + $0x8] sm:$0xf]
    %v876 = vld [vmem:[#allocation5 + $0xc] sm:$0xf]
    %v877 = vld [vmem:[#allocation5 + $0x10] sm:$0xf]
    %v878 = vld [vmem:[#allocation5 + $0x14] sm:$0xf]
    %v879 = vld [vmem:[#allocation5 + $0x18] sm:$0xf]
    %v880 = vld [vmem:[#allocation5 + $0x1c] sm:$0xf]
    %v881 = vld [vmem:[#allocation5 + $0x20] sm:$0xf]
    %v882 = vld [vmem:[#allocation5 + $0x24] sm:$0xf]
    %v883 = vld [vmem:[#allocation5 + $0x28] sm:$0xf]
    %v884 = vld [vmem:[#allocation5 + $0x2c] sm:$0xf]
    %v885 = vld [vmem:[#allocation5 + $0x30] sm:$0xf]
    %v886 = vld [vmem:[#allocation5 + $0x34] sm:$0xf]
    %v887 = vld [vmem:[#allocation5 + $0x38] sm:$0xf]
    %v888 = vld [vmem:[#allocation5 + $0x3c] sm:$0xf]
    %v889 = vld [vmem:[#allocation5 + $0x40] sm:$0xf]
    %v890 = vld [vmem:[#allocation5 + $0x44] sm:$0xf]
    %v891 = vld [vmem:[#allocation5 + $0x48] sm:$0xf]
    %v892 = vld [vmem:[#allocation5 + $0x4c] sm:$0xf]
    %v893 = vld [vmem:[#allocation5 + $0x50] sm:$0xf]
    %v894 = vld [vmem:[#allocation5 + $0x54] sm:$0xf]
    %v895 = vld [vmem:[#allocation5 + $0x58] sm:$0xf]
    %v896 = vld [vmem:[#allocation5 + $0x5c] sm:$0xf]
    %v897 = vld [vmem:[#allocation5 + $0x60] sm:$0xf]
    %v898 = vld [vmem:[#allocation5 + $0x64] sm:$0xf]
    %v899 = vld [vmem:[#allocation5 + $0x68] sm:$0xf]
    %v900 = vld [vmem:[#allocation5 + $0x6c] sm:$0xf]
    %v901 = vld [vmem:[#allocation5 + $0x70] sm:$0xf]
    %v902 = vld [vmem:[#allocation5 + $0x74] sm:$0xf]
    %v903 = vld [vmem:[#allocation5 + $0x78] sm:$0xf]
    %v904 = vld [vmem:[#allocation5 + $0x7c] sm:$0xf]
    %v937 = vunpack.c.l.b16 %v873
    %v938 = vunpack.c.l.b16 %v874
    %v939 = vunpack.c.l.b16 %v875
    %v940 = vunpack.c.l.b16 %v876
    %v941 = vunpack.c.l.b16 %v877
    %v942 = vunpack.c.l.b16 %v878
    %v943 = vunpack.c.l.b16 %v879
    %v944 = vunpack.c.l.b16 %v880
    %v945 = vunpack.c.l.b16 %v881
    %v946 = vunpack.c.l.b16 %v882
    %v947 = vunpack.c.l.b16 %v883
    %v948 = vunpack.c.l.b16 %v884
    %v949 = vunpack.c.l.b16 %v885
    %v950 = vunpack.c.l.b16 %v886
    %v951 = vunpack.c.l.b16 %v887
    %v952 = vunpack.c.l.b16 %v888
    %v953 = vunpack.c.l.b16 %v889
    %v954 = vunpack.c.l.b16 %v890
    %v955 = vunpack.c.l.b16 %v891
    %v956 = vunpack.c.l.b16 %v892
    %v957 = vunpack.c.l.b16 %v893
    %v958 = vunpack.c.l.b16 %v894
    %v959 = vunpack.c.l.b16 %v895
    %v960 = vunpack.c.l.b16 %v896
    %v961 = vunpack.c.l.b16 %v897
    %v962 = vunpack.c.l.b16 %v898
    %v963 = vunpack.c.l.b16 %v899
    %v964 = vunpack.c.l.b16 %v900
    %v965 = vunpack.c.l.b16 %v901
    %v966 = vunpack.c.l.b16 %v902
    %v967 = vunpack.c.l.b16 %v903
    %v968 = vunpack.c.l.b16 %v904
    %v969 = vpack.c.b16 %v938, %v937
    %v970 = vpack.c.b16 %v940, %v939
    %v971 = vpack.c.b16 %v942, %v941
    %v972 = vpack.c.b16 %v944, %v943
    %v973 = vpack.c.b16 %v946, %v945
    %v974 = vpack.c.b16 %v948, %v947
    %v975 = vpack.c.b16 %v950, %v949
    %v976 = vpack.c.b16 %v952, %v951
    %v977 = vpack.c.b16 %v954, %v953
    %v978 = vpack.c.b16 %v956, %v955
    %v979 = vpack.c.b16 %v958, %v957
    %v980 = vpack.c.b16 %v960, %v959
    %v981 = vpack.c.b16 %v962, %v961
    %v982 = vpack.c.b16 %v964, %v963
    %v983 = vpack.c.b16 %v966, %v965
    %v984 = vpack.c.b16 %v968, %v967
    %1001 = vmatprep.subr.bf16.mxu0 0
    %1002 = vmatpush1.bf16.msra.mxu0 %v969
    %1003 = vmatprep.subr.bf16.mxu0 0
    %1004 = vmatpush1.bf16.msra.mxu0 %v970
    %1005 = vmatprep.subr.bf16.mxu0 0
    %1006 = vmatpush1.bf16.msra.mxu0 %v971
    %1007 = vmatprep.subr.bf16.mxu0 0
    %1008 = vmatpush1.bf16.msra.mxu0 %v972
    %1009 = vmatprep.subr.bf16.mxu0 0
    %1010 = vmatpush1.bf16.msra.mxu0 %v973
    %1011 = vmatprep.subr.bf16.mxu0 0
    %1012 = vmatpush1.bf16.msra.mxu0 %v974
    %1013 = vmatprep.subr.bf16.mxu0 0
    %1014 = vmatpush1.bf16.msra.mxu0 %v975
    %1015 = vmatprep.subr.bf16.mxu0 0
    %1016 = vmatpush1.bf16.msra.mxu0 %v976
    %1017 = vmatprep.subr.bf16.mxu0 0
    %1018 = vmatpush1.bf16.msra.mxu0 %v977
    %1019 = vmatprep.subr.bf16.mxu0 0
    %1020 = vmatpush1.bf16.msra.mxu0 %v978
    %1021 = vmatprep.subr.bf16.mxu0 0
    %1022 = vmatpush1.bf16.msra.mxu0 %v979
    %1023 = vmatprep.subr.bf16.mxu0 0
    %1024 = vmatpush1.bf16.msra.mxu0 %v980
    %1025 = vmatprep.subr.bf16.mxu0 0
    %1026 = vmatpush1.bf16.msra.mxu0 %v981
    %1027 = vmatprep.subr.bf16.mxu0 0
    %1028 = vmatpush1.bf16.msra.mxu0 %v982
    %1029 = vmatprep.subr.bf16.mxu0 0
    %1030 = vmatpush1.bf16.msra.mxu0 %v983
    %1031 = vmatprep.subr.bf16.mxu0 0
    %1032 = vmatpush1.bf16.msra.mxu0 %v984
    %1033 = vmatprep.mubr.bf16.mxu0 %v872
    %1034 = vmatmul.mubr.bf16.gmra.mrb[0].mxu0 %v871
    %v1035 = vpop.f32.mrb[0].mxu0
    %v1036 = vadd.f32 0.0, %v1035
    %v1037 = vpop.f32.mrb[0].mxu0
    %v1038 = vpop.f32.mrb[0].mxu0
    %v1039 = vpop.f32.mrb[0].mxu0
    %1040 = vdwg.mxu0
    %v1041 = vunpack.c.l.bf16 %v871
    %v1042 = vsub.f32 64.0, %v1041
    %v1043 = vmax.f32 %v1042, 1.0
    %v1044 = vrcp.pop %v1043
    %1046 = vset.pattern.permute.xlu0 0
    %1047 = vperm.xlu0 %1046, %v1044
    %v1048 = vpop.permute.xlu0 %1047
    %v1050 = vmul.f32 %v1036, %v1048
    %1051 = vst [vmem:[#allocation7] sm:$0xff] %v1050
    // Predicated region
    $region18: #{tpu_custom_call.1} parent=1 // pred_check
      _
    $region19: #{tpu_custom_call.1} parent=1 // pred_check_branch
      %1053 = sbr.rel (0) target = $region21
    $region20: #{tpu_custom_call.1} parent=1 // pred_region
      %s1055 = ssub.s32 128, 128
      %1056 = vsyncadd [#allocation4], %s1055
      %s1058 = sshll.u32 [#allocation7], 4
      %s1059 = int_to_ptr.vmem [resolvable:$true] %s1058
      %1061 = dma.vmem_to_hbm [thread:$0]  %s1059, 128, %s2, [#allocation4]
    $region21: #{tpu_custom_call.1} parent=1 // pred_fallthru
      _
    // Predicated region
    $region22: #{tpu_custom_call.1} parent=1 // pred_check
      _
    $region23: #{tpu_custom_call.1} parent=1 // pred_check_branch
      %1063 = sbr.rel (0) target = $region25
    $region24: #{tpu_custom_call.1} parent=1 // pred_region
      %1064 = dma.done [#allocation4], 128
    $region25: #{tpu_custom_call.1} parent=1 // pred_fallthru
      _
    %1065 = vsyncpa [#allocation3], 1
    %1066 = vsyncpa [#allocation6], 1
    %1067 = vsyncpa [#allocation4], 1

</llo_original>
